<compile_context>
chip_gen: v6e
topology: v6e:2x2x1
jax: 0.10.0
libtpu: 0.0.40
codegen_flags: <defaults>
</compile_context>

<pallas_src>
import jax
import jax.numpy as jnp
from jax.experimental import pallas as pl
from jax.experimental.pallas import tpu as pltpu


# ------------------------------ fused kernel --------------------------------
def _nonlocal_kernel(x_ref, xsub_ref, wth_ref, bth_ref, wpg_ref, bpg_ref,
                     ww_ref, bw_ref, z_ref, mt_ref):
    # Per-(batch, query-tile) block:
    #   x_ref    : (1, C,  TQ)      channels-first activation tile (f32)
    #   xsub_ref : (1, 4, HWp, C)   four 2x-subsampled shifted views (bf16)
    #   wth_ref  : (ICp, C)         theta weight, zero-padded to ICp (bf16)
    #   bth_ref  : (ICp, 1)         theta bias (f32)
    #   wpg_ref  : (C, 2*ICp)       [phi | g] weights (bf16)
    #   bpg_ref  : (1, 2*ICp)       [phi | g] biases (f32)
    #   ww_ref   : (C, ICp)         W conv weight with BN folded (bf16)
    #   bw_ref   : (C, 1)           W conv bias with BN folded (f32)
    #   z_ref    : (1, C, TQ)       output tile (f32)
    #   mt_ref   : (ICp, ICp)       VMEM scratch: M^T = (phi^T @ g / N)^T
    icp = wth_ref.shape[0]
    hwp = xsub_ref.shape[2]
    inv_n = 1.0 / float(hwp)                       # N = f.size(-1) = HW/4

    # -------- once per batch (q == 0): pooled phi/g and the mixing matrix.
    @pl.when(pl.program_id(1) == 0)
    def _():
        wpg = wpg_ref[...]                         # (C, 2*ICp) bf16
        # 1x1 conv commutes with the 2x2 max-pool: pool(conv(x)) ==
        # elementwise max over the four spatially shifted sub-sampled views.
        pg = jnp.dot(xsub_ref[0, 0, :, :], wpg,
                     preferred_element_type=jnp.float32)
        for s in range(1, 4):
            pg = jnp.maximum(
                pg, jnp.dot(xsub_ref[0, s, :, :], wpg,
                            preferred_element_type=jnp.float32))
        pg = pg + bpg_ref[...]                     # (HWp, 2*ICp) f32
        phi = pg[:, :icp].astype(jnp.bfloat16)     # (HWp, ICp)
        g = pg[:, icp:].astype(jnp.bfloat16)       # (HWp, ICp)
        # No softmax -> attention is linear; store M^T = g^T @ phi (scaled by
        # 1/N) so the per-tile path stays channels-first plain matmuls.
        mt_ref[...] = jax.lax.dot_general(
            g, phi, (((0,), (0,)), ((), ())),
            preferred_element_type=jnp.float32) * inv_n

    # -------- per query tile, all channels-first (lane = TQ).
    x_tile = x_ref[0, :, :]                        # (C, TQ) f32 (exact residual)
    x_bf = x_tile.astype(jnp.bfloat16)

    # theta(x)^T : (ICp, TQ)
    theta_t = (jnp.dot(wth_ref[...], x_bf,
                       preferred_element_type=jnp.float32) + bth_ref[...])

    # y^T = M^T @ theta^T : (ICp, TQ)
    y_t = jnp.dot(mt_ref[...].astype(jnp.bfloat16),
                  theta_t.astype(jnp.bfloat16),
                  preferred_element_type=jnp.float32)

    # W(y) with BN folded, plus residual : (C, TQ), lane-dense store.
    wy = (jnp.dot(ww_ref[...], y_t.astype(jnp.bfloat16),
                  preferred_element_type=jnp.float32) + bw_ref[...])
    z_ref[0, :, :] = wy + x_tile


# --------------------------------- wrapper -----------------------------------
def _round_up(v, m):
    return (v + m - 1) // m * m


def _pick_tq(hw):
    # Largest lane-dense tile (multiple of 128) dividing HW, capped at 512 so
    # the double-buffered (C, TQ) slabs fit comfortably on all generations.
    if hw % 128 != 0:
        return hw                                  # single (lane-padded) tile
    for t in (512, 384, 256, 128):
        if hw % t == 0:
            return t
    return 128


def nonlocal_block_forward(x, params):
    B, C, H, W = x.shape
    assert H % 2 == 0 and W % 2 == 0, "sub_sample=True needs even H, W"
    IC = params["w_theta"].shape[0]
    ICp = _round_up(max(IC, 128), 128)             # MXU-friendly padded width
    HW = H * W
    HWp = (H // 2) * (W // 2)
    tq = _pick_tq(HW)
    nq = HW // tq

    x = x.astype(jnp.float32)
    x_flat = x.reshape(B, C, HW)                   # channels-first, lane = HW

    # Four spatially shifted 2x-subsampled views (positions-first, bf16): the
    # kernel turns the 2x2 max-pool into an elementwise max of four matmuls.
    subs = [x[:, :, di::2, dj::2].reshape(B, C, HWp).transpose(0, 2, 1)
            for di in (0, 1) for dj in (0, 1)]
    x_sub = jnp.stack(subs, axis=1).astype(jnp.bfloat16)      # (B, 4, HWp, C)

    def pad_rows(w, rows):
        return jnp.zeros((rows, w.shape[1]), w.dtype).at[:w.shape[0]].set(w)

    # theta (channels-first form): (ICp, C) weight, (ICp, 1) bias (zero-padded).
    w_theta = pad_rows(params["w_theta"].reshape(IC, C).astype(jnp.float32), ICp)
    b_theta = jnp.zeros((ICp, 1), jnp.float32).at[:IC, 0].set(
        params["b_theta"].astype(jnp.float32))

    # phi | g fused: (C, 2*ICp) weight, (1, 2*ICp) bias.
    w_phi = pad_rows(params["w_phi"].reshape(IC, C).astype(jnp.float32), ICp)
    w_g = pad_rows(params["w_g"].reshape(IC, C).astype(jnp.float32), ICp)
    w_pg = jnp.concatenate([w_phi, w_g], axis=0).T            # (C, 2*ICp)
    b_pg = jnp.zeros((1, 2 * ICp), jnp.float32)
    b_pg = b_pg.at[0, :IC].set(params["b_phi"].astype(jnp.float32))
    b_pg = b_pg.at[0, ICp:ICp + IC].set(params["b_g"].astype(jnp.float32))

    # Fold eval-mode BatchNorm into the W 1x1 conv: (C, ICp) weight, (C, 1) bias.
    eps = 1e-5
    a = params["bn_gamma"] / jnp.sqrt(params["bn_var"] + eps)            # (C,)
    w_w = params["w_w"].reshape(C, IC).astype(jnp.float32) * a[:, None]
    w_w = jnp.zeros((C, ICp), jnp.float32).at[:, :IC].set(w_w)
    b_w = ((params["b_w"] - params["bn_mean"]) * a
           + params["bn_beta"]).reshape(C, 1).astype(jnp.float32)

    out = pl.pallas_call(
        _nonlocal_kernel,
        grid=(B, nq),
        in_specs=[
            pl.BlockSpec((1, C, tq), lambda b, q: (b, 0, q)),
            pl.BlockSpec((1, 4, HWp, C), lambda b, q: (b, 0, 0, 0)),
            pl.BlockSpec((ICp, C), lambda b, q: (0, 0)),
            pl.BlockSpec((ICp, 1), lambda b, q: (0, 0)),
            pl.BlockSpec((C, 2 * ICp), lambda b, q: (0, 0)),
            pl.BlockSpec((1, 2 * ICp), lambda b, q: (0, 0)),
            pl.BlockSpec((C, ICp), lambda b, q: (0, 0)),
            pl.BlockSpec((C, 1), lambda b, q: (0, 0)),
        ],
        out_specs=pl.BlockSpec((1, C, tq), lambda b, q: (b, 0, q)),
        out_shape=jax.ShapeDtypeStruct((B, C, HW), jnp.float32),
        scratch_shapes=[pltpu.VMEM((ICp, ICp), jnp.float32)],
        compiler_params=pltpu.CompilerParams(
            dimension_semantics=("parallel", "arbitrary"),
            vmem_limit_bytes=48 * 1024 * 1024),
    )(x_flat, x_sub,
      w_theta.astype(jnp.bfloat16), b_theta,
      w_pg.astype(jnp.bfloat16), b_pg,
      w_w.astype(jnp.bfloat16), b_w)

    return out.reshape(B, C, H, W)


# --------------------------- pure-JAX reference ------------------------------
def _nonlocal_ref(x, params):
    B, C, H, W = x.shape
    IC = params["w_theta"].shape[0]

    def conv1x1(v, w, b):
        o = w.shape[0]
        return (jnp.einsum('oi,bihw->bohw', w.reshape(o, -1), v)
                + b.reshape(1, o, 1, 1))

    def pool(v):
        b_, c_, h_, w_ = v.shape
        return v.reshape(b_, c_, h_ // 2, 2, w_ // 2, 2).max(axis=(3, 5))

    g_x = pool(conv1x1(x, params["w_g"], params["b_g"])
               ).reshape(B, IC, -1).transpose(0, 2, 1)
    theta_x = conv1x1(x, params["w_theta"], params["b_theta"]
                      ).reshape(B, IC, -1).transpose(0, 2, 1)
    phi_x = pool(conv1x1(x, params["w_phi"], params["b_phi"])
                 ).reshape(B, IC, -1)
    f = theta_x @ phi_x
    f_div = f / f.shape[-1]
    y = (f_div @ g_x).transpose(0, 2, 1).reshape(B, IC, H, W)
    wy = conv1x1(y, params["w_w"], params["b_w"])
    eps = 1e-5
    a = (params["bn_gamma"] / jnp.sqrt(params["bn_var"] + eps)).reshape(1, C, 1, 1)
    wy = (wy - params["bn_mean"].reshape(1, C, 1, 1)) * a \
        + params["bn_beta"].reshape(1, C, 1, 1)
    return wy + x


if __name__ == "__main__":
    # _NonLocalBlockND(in_channels=4) -> inter_channels = 2, dimension=2,
    # sub_sample=True, bn_layer=True.
    B, C, H, W = 2, 4, 16, 16
    IC = max(C // 2, 1)

    key = jax.random.PRNGKey(0)
    ks = jax.random.split(key, 13)
    params = {
        "w_theta": jax.random.normal(ks[0], (IC, C, 1, 1), jnp.float32) * 0.1,
        "b_theta": jax.random.normal(ks[1], (IC,), jnp.float32) * 0.1,
        "w_phi":   jax.random.normal(ks[2], (IC, C, 1, 1), jnp.float32) * 0.1,
        "b_phi":   jax.random.normal(ks[3], (IC,), jnp.float32) * 0.1,
        "w_g":     jax.random.normal(ks[4], (IC, C, 1, 1), jnp.float32) * 0.1,
        "b_g":     jax.random.normal(ks[5], (IC,), jnp.float32) * 0.1,
        "w_w":     jax.random.normal(ks[6], (C, IC, 1, 1), jnp.float32) * 0.1,
        "b_w":     jax.random.normal(ks[7], (C,), jnp.float32) * 0.1,
        # NOTE: the PyTorch module initialises BN weight/bias to 0 (so z == x);
        # random values are used here so the whole non-local path is exercised.
        "bn_gamma": 1.0 + jax.random.normal(ks[8], (C,), jnp.float32) * 0.1,
        "bn_beta":  jax.random.normal(ks[9], (C,), jnp.float32) * 0.1,
        "bn_mean":  jax.random.normal(ks[10], (C,), jnp.float32) * 0.1,
        "bn_var":   jax.random.uniform(ks[11], (C,), jnp.float32, 0.5, 1.5),
    }
    x = jax.random.normal(ks[12], (B, C, H, W), jnp.float32)

    out = nonlocal_block_forward(x, params)
    jax.block_until_ready(out)

    ref = _nonlocal_ref(x, params)
    err = float(jnp.max(jnp.abs(out - ref)))
    assert err < 1e-2, f"max abs error vs reference: {err}"
    print("KERNEL_OK")
</pallas_src>

<mosaic_0001>
module attributes {stable_mosaic.version = 11 : i64} {
  func.func @_nonlocal_kernel(%arg0: i32, %arg1: i32, %arg2: memref<1x4x256xf32, #tpu.memory_space<vmem>>, %arg3: memref<1x4x64x4xbf16, #tpu.memory_space<vmem>>, %arg4: memref<128x4xbf16, #tpu.memory_space<vmem>>, %arg5: memref<128x1xf32, #tpu.memory_space<vmem>>, %arg6: memref<4x256xbf16, #tpu.memory_space<vmem>>, %arg7: memref<1x256xf32, #tpu.memory_space<vmem>>, %arg8: memref<4x128xbf16, #tpu.memory_space<vmem>>, %arg9: memref<4x1xf32, #tpu.memory_space<vmem>>, %arg10: memref<1x4x256xf32, #tpu.memory_space<vmem>>, %arg11: memref<128x128xf32, #tpu.memory_space<vmem>>) attributes {dimension_semantics = [#tpu.dimension_semantics<parallel>, #tpu.dimension_semantics<arbitrary>], iteration_bounds = array<i64: 2, 1>, scalar_prefetch = 0 : i64, scratch_operands = 1 : i64, tpu.core_type = #tpu.core_type<tc>, window_params = [{transform_indices = @transform_0, window_bounds = array<i64: 1, 4, 256>}, {transform_indices = @transform_1, window_bounds = array<i64: 1, 4, 64, 4>}, {pipeline_mode = #tpu.pipeline_mode<synchronous>, transform_indices = @transform_2, window_bounds = array<i64: 128, 4>}, {pipeline_mode = #tpu.pipeline_mode<synchronous>, transform_indices = @transform_3, window_bounds = array<i64: 128, 1>}, {pipeline_mode = #tpu.pipeline_mode<synchronous>, transform_indices = @transform_4, window_bounds = array<i64: 4, 256>}, {pipeline_mode = #tpu.pipeline_mode<synchronous>, transform_indices = @transform_5, window_bounds = array<i64: 1, 256>}, {pipeline_mode = #tpu.pipeline_mode<synchronous>, transform_indices = @transform_6, window_bounds = array<i64: 4, 128>}, {pipeline_mode = #tpu.pipeline_mode<synchronous>, transform_indices = @transform_7, window_bounds = array<i64: 4, 1>}, {transform_indices = @transform_8, window_bounds = array<i64: 1, 4, 256>}]} {
    %c0_i32 = arith.constant 0 : i32
    %0 = arith.cmpi eq, %arg1, %c0_i32 : i32
    %1 = arith.extui %0 : i1 to i32
    %c0_i32_0 = arith.constant 0 : i32
    %2 = arith.cmpi ne, %1, %c0_i32_0 : i32
    scf.if %2 {
      %c0_18 = arith.constant 0 : index
      %c0_19 = arith.constant 0 : index
      %25 = vector.load %arg6[%c0_18, %c0_19] : memref<4x256xbf16, #tpu.memory_space<vmem>>, vector<4x256xbf16>
      %c0_20 = arith.constant 0 : index
      %c0_21 = arith.constant 0 : index
      %c0_22 = arith.constant 0 : index
      %c0_23 = arith.constant 0 : index
      %26 = vector.load %arg3[%c0_20, %c0_21, %c0_22, %c0_23] : memref<1x4x64x4xbf16, #tpu.memory_space<vmem>>, vector<1x1x64x4xbf16>
      %27 = vector.shape_cast %26 : vector<1x1x64x4xbf16> to vector<64x4xbf16>
      %cst_24 = arith.constant dense<0.000000e+00> : vector<64x256xf32>
      %28 = tpu.matmul %27, %25, %cst_24 {dimension_numbers = #tpu.dot_dimension_numbers<[1], [0], [0], [1], [0, 0, 1, 1], [], []>} : vector<64x4xbf16>, vector<4x256xbf16>, vector<64x256xf32> -> vector<64x256xf32>
      %c0_25 = arith.constant 0 : index
      %c1 = arith.constant 1 : index
      %c0_26 = arith.constant 0 : index
      %c0_27 = arith.constant 0 : index
      %29 = vector.load %arg3[%c0_25, %c1, %c0_26, %c0_27] : memref<1x4x64x4xbf16, #tpu.memory_space<vmem>>, vector<1x1x64x4xbf16>
      %30 = vector.shape_cast %29 : vector<1x1x64x4xbf16> to vector<64x4xbf16>
      %cst_28 = arith.constant dense<0.000000e+00> : vector<64x256xf32>
      %31 = tpu.matmul %30, %25, %cst_28 {dimension_numbers = #tpu.dot_dimension_numbers<[1], [0], [0], [1], [0, 0, 1, 1], [], []>} : vector<64x4xbf16>, vector<4x256xbf16>, vector<64x256xf32> -> vector<64x256xf32>
      %32 = arith.maximumf %28, %31 : vector<64x256xf32>
      %c0_29 = arith.constant 0 : index
      %c2 = arith.constant 2 : index
      %c0_30 = arith.constant 0 : index
      %c0_31 = arith.constant 0 : index
      %33 = vector.load %arg3[%c0_29, %c2, %c0_30, %c0_31] : memref<1x4x64x4xbf16, #tpu.memory_space<vmem>>, vector<1x1x64x4xbf16>
      %34 = vector.shape_cast %33 : vector<1x1x64x4xbf16> to vector<64x4xbf16>
      %cst_32 = arith.constant dense<0.000000e+00> : vector<64x256xf32>
      %35 = tpu.matmul %34, %25, %cst_32 {dimension_numbers = #tpu.dot_dimension_numbers<[1], [0], [0], [1], [0, 0, 1, 1], [], []>} : vector<64x4xbf16>, vector<4x256xbf16>, vector<64x256xf32> -> vector<64x256xf32>
      %36 = arith.maximumf %32, %35 : vector<64x256xf32>
      %c0_33 = arith.constant 0 : index
      %c3 = arith.constant 3 : index
      %c0_34 = arith.constant 0 : index
      %c0_35 = arith.constant 0 : index
      %37 = vector.load %arg3[%c0_33, %c3, %c0_34, %c0_35] : memref<1x4x64x4xbf16, #tpu.memory_space<vmem>>, vector<1x1x64x4xbf16>
      %38 = vector.shape_cast %37 : vector<1x1x64x4xbf16> to vector<64x4xbf16>
      %cst_36 = arith.constant dense<0.000000e+00> : vector<64x256xf32>
      %39 = tpu.matmul %38, %25, %cst_36 {dimension_numbers = #tpu.dot_dimension_numbers<[1], [0], [0], [1], [0, 0, 1, 1], [], []>} : vector<64x4xbf16>, vector<4x256xbf16>, vector<64x256xf32> -> vector<64x256xf32>
      %40 = arith.maximumf %36, %39 : vector<64x256xf32>
      %c0_37 = arith.constant 0 : index
      %c0_38 = arith.constant 0 : index
      %41 = vector.load %arg7[%c0_37, %c0_38] : memref<1x256xf32, #tpu.memory_space<vmem>>, vector<1x256xf32>
      %42 = vector.broadcast %41 : vector<1x256xf32> to vector<64x256xf32>
      %43 = arith.addf %40, %42 : vector<64x256xf32>
      %44 = vector.extract_strided_slice %43 {offsets = [0, 0], sizes = [64, 128], strides = [1, 1]} : vector<64x256xf32> to vector<64x128xf32>
      %45 = arith.truncf %44 : vector<64x128xf32> to vector<64x128xbf16>
      %46 = vector.extract_strided_slice %43 {offsets = [0, 128], sizes = [64, 128], strides = [1, 1]} : vector<64x256xf32> to vector<64x128xf32>
      %47 = arith.truncf %46 : vector<64x128xf32> to vector<64x128xbf16>
      %cst_39 = arith.constant dense<0.000000e+00> : vector<128x128xf32>
      %48 = tpu.matmul %47, %45, %cst_39 {dimension_numbers = #tpu.dot_dimension_numbers<[0], [0], [1], [1], [0, 1, 1, 1], [], []>} : vector<64x128xbf16>, vector<64x128xbf16>, vector<128x128xf32> -> vector<128x128xf32>
      %cst_40 = arith.constant 1.562500e-02 : f32
      %49 = vector.broadcast %cst_40 : f32 to vector<128x128xf32>
      %50 = arith.mulf %48, %49 : vector<128x128xf32>
      %c0_41 = arith.constant 0 : index
      %c0_42 = arith.constant 0 : index
      %51 = vector.load %arg11[%c0_41, %c0_42] : memref<128x128xf32, #tpu.memory_space<vmem>>, vector<128x128xf32>
      tpu.vector_store %arg11[%c0_41, %c0_42], %50 {strides = array<i32>} : memref<128x128xf32, #tpu.memory_space<vmem>>, vector<128x128xf32>,
    } else {
    }
    %c0 = arith.constant 0 : index
    %c0_1 = arith.constant 0 : index
    %c0_2 = arith.constant 0 : index
    %3 = vector.load %arg2[%c0, %c0_1, %c0_2] : memref<1x4x256xf32, #tpu.memory_space<vmem>>, vector<1x4x256xf32>
    %4 = vector.shape_cast %3 : vector<1x4x256xf32> to vector<4x256xf32>
    %5 = arith.truncf %4 : vector<4x256xf32> to vector<4x256xbf16>
    %c0_3 = arith.constant 0 : index
    %c0_4 = arith.constant 0 : index
    %6 = vector.load %arg4[%c0_3, %c0_4] : memref<128x4xbf16, #tpu.memory_space<vmem>>, vector<128x4xbf16>
    %cst = arith.constant dense<0.000000e+00> : vector<128x256xf32>
    %7 = tpu.matmul %6, %5, %cst {dimension_numbers = #tpu.dot_dimension_numbers<[1], [0], [0], [1], [0, 0, 1, 1], [], []>} : vector<128x4xbf16>, vector<4x256xbf16>, vector<128x256xf32> -> vector<128x256xf32>
    %c0_5 = arith.constant 0 : index
    %c0_6 = arith.constant 0 : index
    %8 = vector.load %arg5[%c0_5, %c0_6] : memref<128x1xf32, #tpu.memory_space<vmem>>, vector<128x1xf32>
    %9 = vector.broadcast %8 : vector<128x1xf32> to vector<128x256xf32>
    %10 = arith.addf %7, %9 : vector<128x256xf32>
    %c0_7 = arith.constant 0 : index
    %c0_8 = arith.constant 0 : index
    %11 = vector.load %arg11[%c0_7, %c0_8] : memref<128x128xf32, #tpu.memory_space<vmem>>, vector<128x128xf32>
    %12 = arith.truncf %11 : vector<128x128xf32> to vector<128x128xbf16>
    %13 = arith.truncf %10 : vector<128x256xf32> to vector<128x256xbf16>
    %cst_9 = arith.constant dense<0.000000e+00> : vector<128x256xf32>
    %14 = tpu.matmul %12, %13, %cst_9 {dimension_numbers = #tpu.dot_dimension_numbers<[1], [0], [0], [1], [0, 0, 1, 1], [], []>} : vector<128x128xbf16>, vector<128x256xbf16>, vector<128x256xf32> -> vector<128x256xf32>
    %c0_10 = arith.constant 0 : index
    %c0_11 = arith.constant 0 : index
    %15 = vector.load %arg8[%c0_10, %c0_11] : memref<4x128xbf16, #tpu.memory_space<vmem>>, vector<4x128xbf16>
    %16 = arith.truncf %14 : vector<128x256xf32> to vector<128x256xbf16>
    %cst_12 = arith.constant dense<0.000000e+00> : vector<4x256xf32>
    %17 = tpu.matmul %15, %16, %cst_12 {dimension_numbers = #tpu.dot_dimension_numbers<[1], [0], [0], [1], [0, 0, 1, 1], [], []>} : vector<4x128xbf16>, vector<128x256xbf16>, vector<4x256xf32> -> vector<4x256xf32>
    %c0_13 = arith.constant 0 : index
    %c0_14 = arith.constant 0 : index
    %18 = vector.load %arg9[%c0_13, %c0_14] : memref<4x1xf32, #tpu.memory_space<vmem>>, vector<4x1xf32>
    %19 = vector.broadcast %18 : vector<4x1xf32> to vector<4x256xf32>
    %20 = arith.addf %17, %19 : vector<4x256xf32>
    %21 = arith.addf %20, %4 : vector<4x256xf32>
    %c0_15 = arith.constant 0 : index
    %c0_16 = arith.constant 0 : index
    %c0_17 = arith.constant 0 : index
    %22 = vector.load %arg10[%c0_15, %c0_16, %c0_17] : memref<1x4x256xf32, #tpu.memory_space<vmem>>, vector<1x4x256xf32>
    %23 = vector.shape_cast %22 : vector<1x4x256xf32> to vector<4x256xf32>
    %24 = vector.shape_cast %21 : vector<4x256xf32> to vector<1x4x256xf32>
    tpu.vector_store %arg10[%c0_15, %c0_16, %c0_17], %24 {strides = array<i32>} : memref<1x4x256xf32, #tpu.memory_space<vmem>>, vector<1x4x256xf32>,
    return
  }
  func.func @transform_0(%arg0: i32, %arg1: i32) -> (i32, i32, i32) {
    %c0_i32 = arith.constant 0 : i32
    %c0_i32_0 = arith.constant 0 : i32
    return %arg0, %c0_i32, %arg1 : i32, i32, i32
  }
  func.func @transform_1(%arg0: i32, %arg1: i32) -> (i32, i32, i32, i32) {
    %c0_i32 = arith.constant 0 : i32
    %c0_i32_0 = arith.constant 0 : i32
    %c0_i32_1 = arith.constant 0 : i32
    %c0_i32_2 = arith.constant 0 : i32
    return %arg0, %c0_i32, %c0_i32_0, %c0_i32_1 : i32, i32, i32, i32
  }
  func.func @transform_2(%arg0: i32, %arg1: i32) -> (i32, i32) {
    %c0_i32 = arith.constant 0 : i32
    %c0_i32_0 = arith.constant 0 : i32
    %c0_i32_1 = arith.constant 0 : i32
    return %c0_i32, %c0_i32_0 : i32, i32
  }
  func.func @transform_3(%arg0: i32, %arg1: i32) -> (i32, i32) {
    %c0_i32 = arith.constant 0 : i32
    %c0_i32_0 = arith.constant 0 : i32
    %c0_i32_1 = arith.constant 0 : i32
    return %c0_i32, %c0_i32_0 : i32, i32
  }
  func.func @transform_4(%arg0: i32, %arg1: i32) -> (i32, i32) {
    %c0_i32 = arith.constant 0 : i32
    %c0_i32_0 = arith.constant 0 : i32
    %c0_i32_1 = arith.constant 0 : i32
    return %c0_i32, %c0_i32_0 : i32, i32
  }
  func.func @transform_5(%arg0: i32, %arg1: i32) -> (i32, i32) {
    %c0_i32 = arith.constant 0 : i32
    %c0_i32_0 = arith.constant 0 : i32
    %c0_i32_1 = arith.constant 0 : i32
    return %c0_i32, %c0_i32_0 : i32, i32
  }
  func.func @transform_6(%arg0: i32, %arg1: i32) -> (i32, i32) {
    %c0_i32 = arith.constant 0 : i32
    %c0_i32_0 = arith.constant 0 : i32
    %c0_i32_1 = arith.constant 0 : i32
    return %c0_i32, %c0_i32_0 : i32, i32
  }
  func.func @transform_7(%arg0: i32, %arg1: i32) -> (i32, i32) {
    %c0_i32 = arith.constant 0 : i32
    %c0_i32_0 = arith.constant 0 : i32
    %c0_i32_1 = arith.constant 0 : i32
    return %c0_i32, %c0_i32_0 : i32, i32
  }
  func.func @transform_8(%arg0: i32, %arg1: i32) -> (i32, i32, i32) {
    %c0_i32 = arith.constant 0 : i32
    %c0_i32_0 = arith.constant 0 : i32
    return %arg0, %c0_i32, %arg1 : i32, i32, i32
  }
}

</mosaic_0001>

<llo_original>
// kernel: tpu_custom_call.1
$region0: #{tpu_custom_call.1}
  #allocation0 [shape = 'u32[]', space=smem, size = 0x4, offset = 0x4, fixed_abs, tag = 'smem constant byte address 0x4 - core index']
  #allocation1 [shape = 'u32[144,128]{1,0:T(1,128)}', space=vmem, size = 0x12000, scoped, tag = 'internal scratch']
  #allocation2 [shape = 'f32[128,128]{1,0:T(8,128)}', space=vmem, size = 0x10000, scoped, tag = 'scratch operand']
  %s0 = inlined_call_operand.vmem [shape: f32[2,4,256], index: 0, kind: input, shape index: {}]
  %s1 = inlined_call_operand.vmem [shape: bf16[2,4,64,4], index: 1, kind: input, shape index: {}]
  %s2 = inlined_call_operand.vmem [shape: bf16[128,4], index: 2, kind: input, shape index: {}]
  %s3 = inlined_call_operand.vmem [shape: f32[128,1], index: 3, kind: input, shape index: {}]
  %s4 = inlined_call_operand.vmem [shape: bf16[4,256], index: 4, kind: input, shape index: {}]
  %s5 = inlined_call_operand.vmem [shape: f32[1,256], index: 5, kind: input, shape index: {}]
  %s6 = inlined_call_operand.vmem [shape: bf16[4,128], index: 6, kind: input, shape index: {}]
  %s7 = inlined_call_operand.vmem [shape: f32[4,1], index: 7, kind: input, shape index: {}]
  %s8 = inlined_call_operand.hbm [shape: f32[2,4,256], index: 8, kind: output, shape index: {}]
  %s9 = sld [smem:[#allocation0]]
  $region69: #{tpu_custom_call.1} parent=0
    _
  %s11 = ssub.s32 1, %s9
  %s12 = scalar_select 0, %s11, %s9
  $region1: #{tpu_custom_call.1} parent=0
    #allocation3 [shape = 'u8[8192]{0}', space=vmem, size = 0x2000, scoped, tag = 'output window, operand 0']
    #allocation4 [shape = 's32[2]{0}', space=sflag, size = 0x8, scoped, tag = 'scoped memory for tpu_custom_call.1']
    %13 = vsyncpa [#allocation4], 0
    %s14 = scalar_lea.sflag [#allocation4], 1
    %15 = vsyncpa %s14, 0
    loop: start=0, step=1, limit=4
    $region2: #{tpu_custom_call.1} parent=1 // loop_pre_header
      _
    $region3: #{tpu_custom_call.1} parent=1 // loop_header
      %s17 = sphi 0, %s21
      %p18 = scmp.ge.s32.totalorder %s17, 4
      %s24 = sphi 0, %s36
      %s25 = sphi 0, %s32
      %s26 = sphi 0, %s24
      %s27 = sphi 0, %s25
      %s28 = sphi 0, %s26
      %s29 = sphi 0, %s27
      %s41 = sphi 0, %s43
      %s44 = sphi 0, %s41
      %s45 = sphi 0, %s44
      %s61 = sphi 0, %s45
      %s67 = sphi 0, %s69
      %s70 = sphi 0, %s67
      %s71 = sphi 0, %s70
      %s87 = sphi 0, %s71
      %s91 = sphi 0, %s91
      %s93 = sphi 0, %s91
      %s94 = sphi 0, %s93
      %s108 = sphi 0, %s94
      %s112 = sphi 0, %s112
      %s114 = sphi 0, %s112
      %s115 = sphi 0, %s114
      %s129 = sphi 0, %s115
      %s133 = sphi 0, %s133
      %s135 = sphi 0, %s133
      %s136 = sphi 0, %s135
      %s150 = sphi 0, %s136
      %s154 = sphi 0, %s154
      %s156 = sphi 0, %s154
      %s157 = sphi 0, %s156
      %s171 = sphi 0, %s157
      %s175 = sphi 0, %s175
      %s177 = sphi 0, %s175
      %s178 = sphi 0, %s177
      %s192 = sphi 0, %s178
      %s196 = sphi 0, %s196
      %s198 = sphi 0, %s196
      %s199 = sphi 0, %s198
      %s213 = sphi 0, %s199
      %s221 = sphi 0, %s223
      %s224 = sphi 0, %s221
      %s225 = sphi 0, %s224
      %s241 = sphi 0, %s225
    $region4: #{tpu_custom_call.1} parent=1 // loop_header_branch
      %20 = sbr.rel (%p18) target = $region8
    $region5: #{tpu_custom_call.1} parent=1 // loop_body
      %s22 = ssub.s32 %s17, 1
      %s23 = ssub.s32 %s17, 2
      %s30 = sadd.s32 1, %s25
      %p31 = scmp.ge.s32.totalorder %s30, 1
      %s32 = scalar_select %p31, 0, %s30
      %s33 = sadd.s32 1, %s24
      %s34 = scalar_select %p31, %s33, %s24
      %p35 = scmp.ge.s32.totalorder %s34, 2
      %s36 = scalar_select %p35, 0, %s34
      %s37 = ssub.s32 %s24, %s36
      %s38 = ssub.s32 %s25, %s32
      %s39 = sor.u32 %s37, %s38
      %p40 = scmp.eq.s32.totalorder %s39, 0
      %s42 = sadd.s32 %s41, 1
      %s43 = scalar_select %p40, %s41, %s42
      %p46 = pneg %p40
      %p47 = scmp.eq.s32.totalorder %s17, 1
      %p48 = por %p46, %p47
      %p49 = scmp.ne.s32.totalorder %s41, %s44
      %p50 = scmp.eq.s32.totalorder %s17, 0
      %p51 = por %p49, %p50
      %p52 = scmp.ne.s32.totalorder %s41, %s44
      %p53 = scmp.eq.s32.totalorder %s22, 1
      %p54 = por %p52, %p53
      %p55 = scmp.ne.s32.totalorder %s44, %s45
      %p56 = scmp.eq.s32.totalorder %s22, 0
      %p57 = por %p55, %p56
      %p58 = scmp.ne.s32.totalorder %s44, %s45
      %p59 = scmp.eq.s32.totalorder %s23, 1
      %p60 = por %p58, %p59
      %p62 = scmp.ne.s32.totalorder %s45, %s61
      %p63 = scmp.eq.s32.totalorder %s23, 0
      %p64 = por %p62, %p63
      %s65 = ssub.s32 %s24, %s36
      %p66 = scmp.eq.s32.totalorder %s65, 0
      %s68 = sadd.s32 %s67, 1
      %s69 = scalar_select %p66, %s67, %s68
      %p72 = pneg %p66
      %p73 = scmp.eq.s32.totalorder %s17, 1
      %p74 = por %p72, %p73
      %p75 = scmp.ne.s32.totalorder %s67, %s70
      %p76 = scmp.eq.s32.totalorder %s17, 0
      %p77 = por %p75, %p76
      %p78 = scmp.ne.s32.totalorder %s67, %s70
      %p79 = scmp.eq.s32.totalorder %s22, 1
      %p80 = por %p78, %p79
      %p81 = scmp.ne.s32.totalorder %s70, %s71
      %p82 = scmp.eq.s32.totalorder %s22, 0
      %p83 = por %p81, %p82
      %p84 = scmp.ne.s32.totalorder %s70, %s71
      %p85 = scmp.eq.s32.totalorder %s23, 1
      %p86 = por %p84, %p85
      %p88 = scmp.ne.s32.totalorder %s71, %s87
      %p89 = scmp.eq.s32.totalorder %s23, 0
      %p90 = por %p88, %p89
      %s92 = sadd.s32 %s91, 1
      %p95 = scmp.eq.s32.totalorder %s17, 1
      %p96 = scmp.ne.s32.totalorder %s91, %s93
      %p97 = scmp.eq.s32.totalorder %s17, 0
      %p98 = por %p96, %p97
      %p99 = scmp.ne.s32.totalorder %s91, %s93
      %p100 = scmp.eq.s32.totalorder %s22, 1
      %p101 = por %p99, %p100
      %p102 = scmp.ne.s32.totalorder %s93, %s94
      %p103 = scmp.eq.s32.totalorder %s22, 0
      %p104 = por %p102, %p103
      %p105 = scmp.ne.s32.totalorder %s93, %s94
      %p106 = scmp.eq.s32.totalorder %s23, 1
      %p107 = por %p105, %p106
      %p109 = scmp.ne.s32.totalorder %s94, %s108
      %p110 = scmp.eq.s32.totalorder %s23, 0
      %p111 = por %p109, %p110
      %s113 = sadd.s32 %s112, 1
      %p116 = scmp.eq.s32.totalorder %s17, 1
      %p117 = scmp.ne.s32.totalorder %s112, %s114
      %p118 = scmp.eq.s32.totalorder %s17, 0
      %p119 = por %p117, %p118
      %p120 = scmp.ne.s32.totalorder %s112, %s114
      %p121 = scmp.eq.s32.totalorder %s22, 1
      %p122 = por %p120, %p121
      %p123 = scmp.ne.s32.totalorder %s114, %s115
      %p124 = scmp.eq.s32.totalorder %s22, 0
      %p125 = por %p123, %p124
      %p126 = scmp.ne.s32.totalorder %s114, %s115
      %p127 = scmp.eq.s32.totalorder %s23, 1
      %p128 = por %p126, %p127
      %p130 = scmp.ne.s32.totalorder %s115, %s129
      %p131 = scmp.eq.s32.totalorder %s23, 0
      %p132 = por %p130, %p131
      %s134 = sadd.s32 %s133, 1
      %p137 = scmp.eq.s32.totalorder %s17, 1
      %p138 = scmp.ne.s32.totalorder %s133, %s135
      %p139 = scmp.eq.s32.totalorder %s17, 0
      %p140 = por %p138, %p139
      %p141 = scmp.ne.s32.totalorder %s133, %s135
      %p142 = scmp.eq.s32.totalorder %s22, 1
      %p143 = por %p141, %p142
      %p144 = scmp.ne.s32.totalorder %s135, %s136
      %p145 = scmp.eq.s32.totalorder %s22, 0
      %p146 = por %p144, %p145
      %p147 = scmp.ne.s32.totalorder %s135, %s136
      %p148 = scmp.eq.s32.totalorder %s23, 1
      %p149 = por %p147, %p148
      %p151 = scmp.ne.s32.totalorder %s136, %s150
      %p152 = scmp.eq.s32.totalorder %s23, 0
      %p153 = por %p151, %p152
      %s155 = sadd.s32 %s154, 1
      %p158 = scmp.eq.s32.totalorder %s17, 1
      %p159 = scmp.ne.s32.totalorder %s154, %s156
      %p160 = scmp.eq.s32.totalorder %s17, 0
      %p161 = por %p159, %p160
      %p162 = scmp.ne.s32.totalorder %s154, %s156
      %p163 = scmp.eq.s32.totalorder %s22, 1
      %p164 = por %p162, %p163
      %p165 = scmp.ne.s32.totalorder %s156, %s157
      %p166 = scmp.eq.s32.totalorder %s22, 0
      %p167 = por %p165, %p166
      %p168 = scmp.ne.s32.totalorder %s156, %s157
      %p169 = scmp.eq.s32.totalorder %s23, 1
      %p170 = por %p168, %p169
      %p172 = scmp.ne.s32.totalorder %s157, %s171
      %p173 = scmp.eq.s32.totalorder %s23, 0
      %p174 = por %p172, %p173
      %s176 = sadd.s32 %s175, 1
      %p179 = scmp.eq.s32.totalorder %s17, 1
      %p180 = scmp.ne.s32.totalorder %s175, %s177
      %p181 = scmp.eq.s32.totalorder %s17, 0
      %p182 = por %p180, %p181
      %p183 = scmp.ne.s32.totalorder %s175, %s177
      %p184 = scmp.eq.s32.totalorder %s22, 1
      %p185 = por %p183, %p184
      %p186 = scmp.ne.s32.totalorder %s177, %s178
      %p187 = scmp.eq.s32.totalorder %s22, 0
      %p188 = por %p186, %p187
      %p189 = scmp.ne.s32.totalorder %s177, %s178
      %p190 = scmp.eq.s32.totalorder %s23, 1
      %p191 = por %p189, %p190
      %p193 = scmp.ne.s32.totalorder %s178, %s192
      %p194 = scmp.eq.s32.totalorder %s23, 0
      %p195 = por %p193, %p194
      %s197 = sadd.s32 %s196, 1
      %p200 = scmp.eq.s32.totalorder %s17, 1
      %p201 = scmp.ne.s32.totalorder %s196, %s198
      %p202 = scmp.eq.s32.totalorder %s17, 0
      %p203 = por %p201, %p202
      %p204 = scmp.ne.s32.totalorder %s196, %s198
      %p205 = scmp.eq.s32.totalorder %s22, 1
      %p206 = por %p204, %p205
      %p207 = scmp.ne.s32.totalorder %s198, %s199
      %p208 = scmp.eq.s32.totalorder %s22, 0
      %p209 = por %p207, %p208
      %p210 = scmp.ne.s32.totalorder %s198, %s199
      %p211 = scmp.eq.s32.totalorder %s23, 1
      %p212 = por %p210, %p211
      %p214 = scmp.ne.s32.totalorder %s199, %s213
      %p215 = scmp.eq.s32.totalorder %s23, 0
      %p216 = por %p214, %p215
      %s217 = ssub.s32 %s24, %s36
      %s218 = ssub.s32 %s25, %s32
      %s219 = sor.u32 %s217, %s218
      %p220 = scmp.eq.s32.totalorder %s219, 0
      %s222 = sadd.s32 %s221, 1
      %s223 = scalar_select %p220, %s221, %s222
      %p226 = pneg %p220
      %p227 = scmp.eq.s32.totalorder %s17, 1
      %p228 = por %p226, %p227
      %p229 = scmp.ne.s32.totalorder %s221, %s224
      %p230 = scmp.eq.s32.totalorder %s17, 0
      %p231 = por %p229, %p230
      %p232 = scmp.ne.s32.totalorder %s221, %s224
      %p233 = scmp.eq.s32.totalorder %s22, 1
      %p234 = por %p232, %p233
      %p235 = scmp.ne.s32.totalorder %s224, %s225
      %p236 = scmp.eq.s32.totalorder %s22, 0
      %p237 = por %p235, %p236
      %p238 = scmp.ne.s32.totalorder %s224, %s225
      %p239 = scmp.eq.s32.totalorder %s23, 1
      %p240 = por %p238, %p239
      %p242 = scmp.ne.s32.totalorder %s225, %s241
      %p243 = scmp.eq.s32.totalorder %s23, 0
      %p244 = por %p242, %p243
      %p245 = scmp.le.s32.totalorder 1, %s17
      %p246 = scmp.lt.s32.totalorder %s17, 3
      %p247 = pnand %p245, %p246
      %p248 = pneg %p247
      // Predicated region
      $region9: #{tpu_custom_call.1} parent=5 // pred_check
        _
      $region10: #{tpu_custom_call.1} parent=5 // pred_check_branch
        %250 = sbr.rel (%p247) target = $region12
      $region11: #{tpu_custom_call.1} parent=5 // pred_region
        %s251 = ssub.s32 %s17, 1
        // Predicated region
        $region13: #{tpu_custom_call.1} parent=11 // pred_check
          %p252 = pneg %p104
        $region14: #{tpu_custom_call.1} parent=11 // pred_check_branch
          %254 = sbr.rel (%p252) target = $region16
        $region15: #{tpu_custom_call.1} parent=11 // pred_region
          _
        $region16: #{tpu_custom_call.1} parent=11 // pred_fallthru
          _
        // Predicated region
        $region17: #{tpu_custom_call.1} parent=11 // pred_check
          %p255 = pneg %p125
        $region18: #{tpu_custom_call.1} parent=11 // pred_check_branch
          %257 = sbr.rel (%p255) target = $region20
        $region19: #{tpu_custom_call.1} parent=11 // pred_region
          _
        $region20: #{tpu_custom_call.1} parent=11 // pred_fallthru
          _
        // Predicated region
        $region21: #{tpu_custom_call.1} parent=11 // pred_check
          %p258 = pneg %p146
        $region22: #{tpu_custom_call.1} parent=11 // pred_check_branch
          %260 = sbr.rel (%p258) target = $region24
        $region23: #{tpu_custom_call.1} parent=11 // pred_region
          _
        $region24: #{tpu_custom_call.1} parent=11 // pred_fallthru
          _
        // Predicated region
        $region25: #{tpu_custom_call.1} parent=11 // pred_check
          %p261 = pneg %p167
        $region26: #{tpu_custom_call.1} parent=11 // pred_check_branch
          %263 = sbr.rel (%p261) target = $region28
        $region27: #{tpu_custom_call.1} parent=11 // pred_region
          _
        $region28: #{tpu_custom_call.1} parent=11 // pred_fallthru
          _
        // Predicated region
        $region29: #{tpu_custom_call.1} parent=11 // pred_check
          %p264 = pneg %p188
        $region30: #{tpu_custom_call.1} parent=11 // pred_check_branch
          %266 = sbr.rel (%p264) target = $region32
        $region31: #{tpu_custom_call.1} parent=11 // pred_region
          _
        $region32: #{tpu_custom_call.1} parent=11 // pred_fallthru
          _
        // Predicated region
        $region33: #{tpu_custom_call.1} parent=11 // pred_check
          %p267 = pneg %p209
        $region34: #{tpu_custom_call.1} parent=11 // pred_check_branch
          %269 = sbr.rel (%p267) target = $region36
        $region35: #{tpu_custom_call.1} parent=11 // pred_region
          _
        $region36: #{tpu_custom_call.1} parent=11 // pred_fallthru
          _
      $region12: #{tpu_custom_call.1} parent=5 // pred_fallthru
        _
      %p270 = scmp.lt.s32.totalorder %s17, 2
      // Predicated region
      $region37: #{tpu_custom_call.1} parent=5 // pred_check
        %p271 = pneg %p270
      $region38: #{tpu_custom_call.1} parent=5 // pred_check_branch
        %273 = sbr.rel (%p271) target = $region40
      $region39: #{tpu_custom_call.1} parent=5 // pred_region
        // Predicated region
        $region41: #{tpu_custom_call.1} parent=39 // pred_check
          %p274 = pneg %p51
        $region42: #{tpu_custom_call.1} parent=39 // pred_check_branch
          %276 = sbr.rel (%p274) target = $region44
        $region43: #{tpu_custom_call.1} parent=39 // pred_region
          %s277 = smul.u32 2, %s25
          %p278 = scmp.lt.s32.totalorder %s24, 1
          %s279 = scalar_select %p278, %s24, 1
          %p280 = scmp.lt.s32.totalorder %s277, 1
          %s281 = scalar_select %p280, %s277, 1
          %s282 = smul.addr %s279, 2
          %s283 = sadd.s32 %s281, %s282
          %s284 = smul.addr %s283, 4
          %s285 = scalar_lea.vmem %s0, %s284
          %s286 = smul.u32 2, %s25
        $region44: #{tpu_custom_call.1} parent=39 // pred_fallthru
          _
        // Predicated region
        $region45: #{tpu_custom_call.1} parent=39 // pred_check
          %p287 = pneg %p77
        $region46: #{tpu_custom_call.1} parent=39 // pred_check_branch
          %289 = sbr.rel (%p287) target = $region48
        $region47: #{tpu_custom_call.1} parent=39 // pred_region
          %p290 = scmp.lt.s32.totalorder %s24, 1
          %s291 = scalar_select %p290, %s24, 1
          %s292 = smul.addr %s291, 32
          %s293 = smul.addr %s292, 4
          %s294 = scalar_lea.vmem %s1, %s293
        $region48: #{tpu_custom_call.1} parent=39 // pred_fallthru
          _
      $region40: #{tpu_custom_call.1} parent=5 // pred_fallthru
        _
      %p295 = scmp.le.s32.totalorder 1, %s17
      %p296 = scmp.lt.s32.totalorder %s17, 3
      %p297 = pnand %p295, %p296
      %p298 = pneg %p297
      // Predicated region
      $region49: #{tpu_custom_call.1} parent=5 // pred_check
        _
      $region50: #{tpu_custom_call.1} parent=5 // pred_check_branch
        %300 = sbr.rel (%p297) target = $region52
      $region51: #{tpu_custom_call.1} parent=5 // pred_region
        %s301 = ssub.s32 %s17, 1
        %s302 = smul.u32 2, %s27
        %p303 = scmp.lt.s32.totalorder %s26, 1
        %s304 = scalar_select %p303, %s26, 1
        %p305 = scmp.lt.s32.totalorder %s302, 1
        %s306 = scalar_select %p305, %s302, 1
        %s307 = smul.addr %s304, 2
        %s308 = sadd.s32 %s306, %s307
        %s309 = smul.addr %s308, 4
        %s310 = scalar_lea.vmem %s0, %s309
        %p311 = pneg %p57
        %p312 = pneg %p54
        %p313 = scmp.lt.s32.totalorder %s26, 1
        %s314 = scalar_select %p313, %s26, 1
        %s315 = smul.addr %s314, 32
        %s316 = smul.addr %s315, 4
        %s317 = scalar_lea.vmem %s1, %s316
        %p318 = pneg %p83
        %p319 = pneg %p80
        %p320 = pneg %p104
        %p321 = pneg %p101
        %p322 = pneg %p125
        %p323 = pneg %p122
        %p324 = pneg %p146
        %p325 = pneg %p143
        %p326 = pneg %p167
        %p327 = pneg %p164
        %p328 = pneg %p188
        %p329 = pneg %p185
        %p330 = pneg %p209
        %p331 = pneg %p206
        %p332 = pneg %p237
        %p333 = pneg %p234
        %s334 = sand.u32 %s224, 1
        %s335 = scalar_lea.sflag [#allocation4], %s334
        %s336 = sand.u32 %s224, 1
        %s337 = smul.addr %s336, 8
        %s338 = scalar_lea.vmem [#allocation3], %s337
        %s339 = smul.u32 2, %s27
        %p340 = scmp.lt.s32.totalorder %s26, 1
        %s341 = scalar_select %p340, %s26, 1
        %p342 = scmp.lt.s32.totalorder %s339, 1
        %s343 = scalar_select %p342, %s339, 1
        %s344 = smul.addr %s341, 2
        %s345 = sadd.s32 %s343, %s344
        %s346 = smul.addr %s345, 4
        %s347 = scalar_lea.vmem %s0, %s346
        %s348 = smul.u32 2, %s27
        %p349 = scmp.lt.s32.totalorder %s26, 1
        %s350 = scalar_select %p349, %s26, 1
        %s351 = smul.addr %s350, 32
        %s352 = smul.addr %s351, 4
        %s353 = scalar_lea.vmem %s1, %s352
        %s354 = smul.u32 2, %s27
        %p356 = scmp.eq.s32.totalorder %s27, 0
        // Predicated region
        $region53: #{tpu_custom_call.1} parent=51 // pred_check
          %p357 = pneg %p356
        $region54: #{tpu_custom_call.1} parent=51 // pred_check_branch
          %359 = sbr.rel (%p357) target = $region56
        $region55: #{tpu_custom_call.1} parent=51 // pred_region
          %v360 = vld [vmem:[%s4] sm:$0xf]
          %v361 = vld [vmem:[%s353] sm:$0xf]
          %v362 = vld [vmem:[%s353 + $0x4] sm:$0xf]
          %v363 = vld [vmem:[%s353 + $0x8] sm:$0xf]
          %v364 = vld [vmem:[%s353 + $0xc] sm:$0xf]
          %v365 = vld [vmem:[%s353 + $0x10] sm:$0xf]
          %v366 = vld [vmem:[%s353 + $0x14] sm:$0xf]
          %v367 = vld [vmem:[%s353 + $0x18] sm:$0xf]
          %v368 = vld [vmem:[%s353 + $0x1c] sm:$0xf]
          %v377 = vunpack.c.l.b16 %v361
          %v378 = vunpack.c.l.b16 %v362
          %v379 = vunpack.c.l.b16 %v363
          %v380 = vunpack.c.l.b16 %v364
          %v381 = vunpack.c.l.b16 %v365
          %v382 = vunpack.c.l.b16 %v366
          %v383 = vunpack.c.l.b16 %v367
          %v384 = vunpack.c.l.b16 %v368
          %v385 = vpack.c.b16 %v378, %v377
          %v386 = vpack.c.b16 %v380, %v379
          %v387 = vpack.c.b16 %v382, %v381
          %v388 = vpack.c.b16 %v384, %v383
          %v391 = vunpack.c.l.s4 1983009808
          %v392 = vunpack.c.0.s8 %v391
          %v393 = vlaneseq
          %v394 = vshrl.u32 %v393, 7
          %v395 = vsub.s32 %v392, %v394
          %v396 = vrot.slane %v360, %v395
          %v397 = vcombine.high %v396, %v396
          %vm398 = vcmask 31744
          %v400 = vsel %vm398, %v385, 0
          %v403 = vsel %vm398, %v386, 0
          %v406 = vsel %vm398, %v387, 0
          %v409 = vsel %vm398, %v388, 0
          %vm411 = vcmask 1041408
          %v413 = vsel %vm411, %v396, 0
          %v416 = vsel %vm411, %v397, 0
          %418 = vmatprep.subr.bf16.mxu0 0
          %419 = vmatpush1.bf16.msra.mxu0 0
          %420 = vmatprep.subr.bf16.mxu0 0
          %421 = vmatpush1.bf16.msra.mxu0 0
          %422 = vmatprep.subr.bf16.mxu0 0
          %423 = vmatpush1.bf16.msra.mxu0 0
          %424 = vmatprep.subr.bf16.mxu0 0
          %425 = vmatpush1.bf16.msra.mxu0 0
          %426 = vmatprep.subr.bf16.mxu0 0
          %427 = vmatpush1.bf16.msra.mxu0 0
          %428 = vmatprep.subr.bf16.mxu0 0
          %429 = vmatpush1.bf16.msra.mxu0 0
          %430 = vmatprep.subr.bf16.mxu0 0
          %431 = vmatpush1.bf16.msra.mxu0 0
          %432 = vmatprep.subr.bf16.mxu0 %v416
          %433 = vmatpush1.bf16.msra.mxu0 %v413
          %434 = vmatprep.subr.bf16.mxu0 0
          %435 = vmatpush2.bf16.msra.mxu0 0
          %436 = vmatprep.subr.bf16.mxu0 0
          %437 = vmatpush2.bf16.msra.mxu0 0
          %438 = vmatprep.subr.bf16.mxu0 0
          %439 = vmatpush2.bf16.msra.mxu0 0
          %440 = vmatprep.subr.bf16.mxu0 0
          %441 = vmatpush2.bf16.msra.mxu0 0
          %442 = vmatprep.subr.bf16.mxu0 0
          %443 = vmatpush2.bf16.msra.mxu0 0
          %444 = vmatprep.subr.bf16.mxu0 0
          %445 = vmatpush2.bf16.msra.mxu0 0
          %446 = vmatprep.subr.bf16.mxu0 0
          %447 = vmatpush2.bf16.msra.mxu0 0
          %448 = vmatprep.subr.bf16.mxu0 0
          %449 = vmatpush2.bf16.msra.mxu0 0
          %450 = vmatprep.mubr.bf16.mxu0 0
          %451 = vmatmul.mubr.bf16.gmra.mxu0 %v400
          %v452 = vpop.f32.mrf.mxu0
          %v453 = vadd.f32 0.0, %v452
          %v454 = vpop.f32.mrf.mxu0
          %v455 = vadd.f32 0.0, %v454
          %v456 = vpop.f32.mrf.mxu0
          %v457 = vadd.f32 0.0, %v456
          %v458 = vpop.f32.mrf.mxu0
          %v459 = vadd.f32 0.0, %v458
          %460 = vmatprep.mubr.bf16.mxu0 0
          %461 = vmatmul.mubr.bf16.gmra.mxu0 %v403
          %v462 = vpop.f32.mrf.mxu0
          %v463 = vadd.f32 0.0, %v462
          %v464 = vpop.f32.mrf.mxu0
          %v465 = vadd.f32 0.0, %v464
          %v466 = vpop.f32.mrf.mxu0
          %v467 = vadd.f32 0.0, %v466
          %v468 = vpop.f32.mrf.mxu0
          %v469 = vadd.f32 0.0, %v468
          %470 = vmatprep.mubr.bf16.mxu0 0
          %471 = vmatmul.mubr.bf16.gmra.mxu0 %v406
          %v472 = vpop.f32.mrf.mxu0
          %v473 = vadd.f32 0.0, %v472
          %v474 = vpop.f32.mrf.mxu0
          %v475 = vadd.f32 0.0, %v474
          %v476 = vpop.f32.mrf.mxu0
          %v477 = vadd.f32 0.0, %v476
          %v478 = vpop.f32.mrf.mxu0
          %v479 = vadd.f32 0.0, %v478
          %480 = vmatprep.mubr.bf16.mxu0 0
          %481 = vmatmul.mubr.bf16.gmra.mxu0 %v409
          %v482 = vpop.f32.mrf.mxu0
          %v483 = vadd.f32 0.0, %v482
          %v484 = vpop.f32.mrf.mxu0
          %v485 = vadd.f32 0.0, %v484
          %v486 = vpop.f32.mrf.mxu0
          %v487 = vadd.f32 0.0, %v486
          %v488 = vpop.f32.mrf.mxu0
          %v489 = vadd.f32 0.0, %v488
          %490 = vdwg.mxu0
          %s491 = scalar_lea.vmem %s353, 32
          %v492 = vld [vmem:[%s491] sm:$0xf]
          %v493 = vld [vmem:[%s491 + $0x4] sm:$0xf]
          %v494 = vld [vmem:[%s491 + $0x8] sm:$0xf]
          %v495 = vld [vmem:[%s491 + $0xc] sm:$0xf]
          %v496 = vld [vmem:[%s491 + $0x10] sm:$0xf]
          %v497 = vld [vmem:[%s491 + $0x14] sm:$0xf]
          %v498 = vld [vmem:[%s491 + $0x18] sm:$0xf]
          %v499 = vld [vmem:[%s491 + $0x1c] sm:$0xf]
          %v508 = vunpack.c.l.b16 %v492
          %v509 = vunpack.c.l.b16 %v493
          %v510 = vunpack.c.l.b16 %v494
          %v511 = vunpack.c.l.b16 %v495
          %v512 = vunpack.c.l.b16 %v496
          %v513 = vunpack.c.l.b16 %v497
          %v514 = vunpack.c.l.b16 %v498
          %v515 = vunpack.c.l.b16 %v499
          %v516 = vpack.c.b16 %v509, %v508
          %v517 = vpack.c.b16 %v511, %v510
          %v518 = vpack.c.b16 %v513, %v512
          %v519 = vpack.c.b16 %v515, %v514
          %v521 = vsel %vm398, %v516, 0
          %v524 = vsel %vm398, %v517, 0
          %v527 = vsel %vm398, %v518, 0
          %v530 = vsel %vm398, %v519, 0
          %532 = vmatprep.subr.bf16.mxu0 0
          %533 = vmatpush1.bf16.msra.mxu0 0
          %534 = vmatprep.subr.bf16.mxu0 0
          %535 = vmatpush1.bf16.msra.mxu0 0
          %536 = vmatprep.subr.bf16.mxu0 0
          %537 = vmatpush1.bf16.msra.mxu0 0
          %538 = vmatprep.subr.bf16.mxu0 0
          %539 = vmatpush1.bf16.msra.mxu0 0
          %540 = vmatprep.subr.bf16.mxu0 0
          %541 = vmatpush1.bf16.msra.mxu0 0
          %542 = vmatprep.subr.bf16.mxu0 0
          %543 = vmatpush1.bf16.msra.mxu0 0
          %544 = vmatprep.subr.bf16.mxu0 0
          %545 = vmatpush1.bf16.msra.mxu0 0
          %546 = vmatprep.subr.bf16.mxu0 %v416
          %547 = vmatpush1.bf16.msra.mxu0 %v413
          %548 = vmatprep.subr.bf16.mxu0 0
          %549 = vmatpush2.bf16.msra.mxu0 0
          %550 = vmatprep.subr.bf16.mxu0 0
          %551 = vmatpush2.bf16.msra.mxu0 0
          %552 = vmatprep.subr.bf16.mxu0 0
          %553 = vmatpush2.bf16.msra.mxu0 0
          %554 = vmatprep.subr.bf16.mxu0 0
          %555 = vmatpush2.bf16.msra.mxu0 0
          %556 = vmatprep.subr.bf16.mxu0 0
          %557 = vmatpush2.bf16.msra.mxu0 0
          %558 = vmatprep.subr.bf16.mxu0 0
          %559 = vmatpush2.bf16.msra.mxu0 0
          %560 = vmatprep.subr.bf16.mxu0 0
          %561 = vmatpush2.bf16.msra.mxu0 0
          %562 = vmatprep.subr.bf16.mxu0 0
          %563 = vmatpush2.bf16.msra.mxu0 0
          %564 = vmatprep.mubr.bf16.mxu0 0
          %565 = vmatmul.mubr.bf16.gmra.mxu0 %v521
          %v566 = vpop.f32.mrf.mxu0
          %v567 = vadd.f32 0.0, %v566
          %v568 = vpop.f32.mrf.mxu0
          %v569 = vadd.f32 0.0, %v568
          %v570 = vpop.f32.mrf.mxu0
          %v571 = vadd.f32 0.0, %v570
          %v572 = vpop.f32.mrf.mxu0
          %v573 = vadd.f32 0.0, %v572
          %574 = vmatprep.mubr.bf16.mxu0 0
          %575 = vmatmul.mubr.bf16.gmra.mxu0 %v524
          %v576 = vpop.f32.mrf.mxu0
          %v577 = vadd.f32 0.0, %v576
          %v578 = vpop.f32.mrf.mxu0
          %v579 = vadd.f32 0.0, %v578
          %v580 = vpop.f32.mrf.mxu0
          %v581 = vadd.f32 0.0, %v580
          %v582 = vpop.f32.mrf.mxu0
          %v583 = vadd.f32 0.0, %v582
          %584 = vmatprep.mubr.bf16.mxu0 0
          %585 = vmatmul.mubr.bf16.gmra.mxu0 %v527
          %v586 = vpop.f32.mrf.mxu0
          %v587 = vadd.f32 0.0, %v586
          %v588 = vpop.f32.mrf.mxu0
          %v589 = vadd.f32 0.0, %v588
          %v590 = vpop.f32.mrf.mxu0
          %v591 = vadd.f32 0.0, %v590
          %v592 = vpop.f32.mrf.mxu0
          %v593 = vadd.f32 0.0, %v592
          %594 = vmatprep.mubr.bf16.mxu0 0
          %595 = vmatmul.mubr.bf16.gmra.mxu0 %v530
          %v596 = vpop.f32.mrf.mxu0
          %v597 = vadd.f32 0.0, %v596
          %v598 = vpop.f32.mrf.mxu0
          %v599 = vadd.f32 0.0, %v598
          %v600 = vpop.f32.mrf.mxu0
          %v601 = vadd.f32 0.0, %v600
          %v602 = vpop.f32.mrf.mxu0
          %v603 = vadd.f32 0.0, %v602
          %604 = vdwg.mxu0
          %v605 = vmax.f32 %v453, %v567
          %v606 = vmax.f32 %v455, %v569
          %v607 = vmax.f32 %v457, %v571
          %v608 = vmax.f32 %v459, %v573
          %v609 = vmax.f32 %v463, %v577
          %v610 = vmax.f32 %v465, %v579
          %v611 = vmax.f32 %v467, %v581
          %v612 = vmax.f32 %v469, %v583
          %v613 = vmax.f32 %v473, %v587
          %v614 = vmax.f32 %v475, %v589
          %v615 = vmax.f32 %v477, %v591
          %v616 = vmax.f32 %v479, %v593
          %v617 = vmax.f32 %v483, %v597
          %v618 = vmax.f32 %v485, %v599
          %v619 = vmax.f32 %v487, %v601
          %v620 = vmax.f32 %v489, %v603
          %s621 = scalar_lea.vmem %s353, 64
          %v622 = vld [vmem:[%s621] sm:$0xf]
          %v623 = vld [vmem:[%s621 + $0x4] sm:$0xf]
          %v624 = vld [vmem:[%s621 + $0x8] sm:$0xf]
          %v625 = vld [vmem:[%s621 + $0xc] sm:$0xf]
          %v626 = vld [vmem:[%s621 + $0x10] sm:$0xf]
          %v627 = vld [vmem:[%s621 + $0x14] sm:$0xf]
          %v628 = vld [vmem:[%s621 + $0x18] sm:$0xf]
          %v629 = vld [vmem:[%s621 + $0x1c] sm:$0xf]
          %v638 = vunpack.c.l.b16 %v622
          %v639 = vunpack.c.l.b16 %v623
          %v640 = vunpack.c.l.b16 %v624
          %v641 = vunpack.c.l.b16 %v625
          %v642 = vunpack.c.l.b16 %v626
          %v643 = vunpack.c.l.b16 %v627
          %v644 = vunpack.c.l.b16 %v628
          %v645 = vunpack.c.l.b16 %v629
          %v646 = vpack.c.b16 %v639, %v638
          %v647 = vpack.c.b16 %v641, %v640
          %v648 = vpack.c.b16 %v643, %v642
          %v649 = vpack.c.b16 %v645, %v644
          %v651 = vsel %vm398, %v646, 0
          %v654 = vsel %vm398, %v647, 0
          %v657 = vsel %vm398, %v648, 0
          %v660 = vsel %vm398, %v649, 0
          %662 = vmatprep.subr.bf16.mxu0 0
          %663 = vmatpush1.bf16.msra.mxu0 0
          %664 = vmatprep.subr.bf16.mxu0 0
          %665 = vmatpush1.bf16.msra.mxu0 0
          %666 = vmatprep.subr.bf16.mxu0 0
          %667 = vmatpush1.bf16.msra.mxu0 0
          %668 = vmatprep.subr.bf16.mxu0 0
          %669 = vmatpush1.bf16.msra.mxu0 0
          %670 = vmatprep.subr.bf16.mxu0 0
          %671 = vmatpush1.bf16.msra.mxu0 0
          %672 = vmatprep.subr.bf16.mxu0 0
          %673 = vmatpush1.bf16.msra.mxu0 0
          %674 = vmatprep.subr.bf16.mxu0 0
          %675 = vmatpush1.bf16.msra.mxu0 0
          %676 = vmatprep.subr.bf16.mxu0 %v416
          %677 = vmatpush1.bf16.msra.mxu0 %v413
          %678 = vmatprep.subr.bf16.mxu0 0
          %679 = vmatpush2.bf16.msra.mxu0 0
          %680 = vmatprep.subr.bf16.mxu0 0
          %681 = vmatpush2.bf16.msra.mxu0 0
          %682 = vmatprep.subr.bf16.mxu0 0
          %683 = vmatpush2.bf16.msra.mxu0 0
          %684 = vmatprep.subr.bf16.mxu0 0
          %685 = vmatpush2.bf16.msra.mxu0 0
          %686 = vmatprep.subr.bf16.mxu0 0
          %687 = vmatpush2.bf16.msra.mxu0 0
          %688 = vmatprep.subr.bf16.mxu0 0
          %689 = vmatpush2.bf16.msra.mxu0 0
          %690 = vmatprep.subr.bf16.mxu0 0
          %691 = vmatpush2.bf16.msra.mxu0 0
          %692 = vmatprep.subr.bf16.mxu0 0
          %693 = vmatpush2.bf16.msra.mxu0 0
          %694 = vmatprep.mubr.bf16.mxu0 0
          %695 = vmatmul.mubr.bf16.gmra.mxu0 %v651
          %v696 = vpop.f32.mrf.mxu0
          %v697 = vadd.f32 0.0, %v696
          %v698 = vpop.f32.mrf.mxu0
          %v699 = vadd.f32 0.0, %v698
          %v700 = vpop.f32.mrf.mxu0
          %v701 = vadd.f32 0.0, %v700
          %v702 = vpop.f32.mrf.mxu0
          %v703 = vadd.f32 0.0, %v702
          %704 = vmatprep.mubr.bf16.mxu0 0
          %705 = vmatmul.mubr.bf16.gmra.mxu0 %v654
          %v706 = vpop.f32.mrf.mxu0
          %v707 = vadd.f32 0.0, %v706
          %v708 = vpop.f32.mrf.mxu0
          %v709 = vadd.f32 0.0, %v708
          %v710 = vpop.f32.mrf.mxu0
          %v711 = vadd.f32 0.0, %v710
          %v712 = vpop.f32.mrf.mxu0
          %v713 = vadd.f32 0.0, %v712
          %714 = vmatprep.mubr.bf16.mxu0 0
          %715 = vmatmul.mubr.bf16.gmra.mxu0 %v657
          %v716 = vpop.f32.mrf.mxu0
          %v717 = vadd.f32 0.0, %v716
          %v718 = vpop.f32.mrf.mxu0
          %v719 = vadd.f32 0.0, %v718
          %v720 = vpop.f32.mrf.mxu0
          %v721 = vadd.f32 0.0, %v720
          %v722 = vpop.f32.mrf.mxu0
          %v723 = vadd.f32 0.0, %v722
          %724 = vmatprep.mubr.bf16.mxu0 0
          %725 = vmatmul.mubr.bf16.gmra.mxu0 %v660
          %v726 = vpop.f32.mrf.mxu0
          %v727 = vadd.f32 0.0, %v726
          %v728 = vpop.f32.mrf.mxu0
          %v729 = vadd.f32 0.0, %v728
          %v730 = vpop.f32.mrf.mxu0
          %v731 = vadd.f32 0.0, %v730
          %v732 = vpop.f32.mrf.mxu0
          %v733 = vadd.f32 0.0, %v732
          %734 = vdwg.mxu0
          %v735 = vmax.f32 %v605, %v697
          %v736 = vmax.f32 %v606, %v699
          %v737 = vmax.f32 %v607, %v701
          %v738 = vmax.f32 %v608, %v703
          %v739 = vmax.f32 %v609, %v707
          %v740 = vmax.f32 %v610, %v709
          %v741 = vmax.f32 %v611, %v711
          %v742 = vmax.f32 %v612, %v713
          %v743 = vmax.f32 %v613, %v717
          %v744 = vmax.f32 %v614, %v719
          %v745 = vmax.f32 %v615, %v721
          %v746 = vmax.f32 %v616, %v723
          %v747 = vmax.f32 %v617, %v727
          %v748 = vmax.f32 %v618, %v729
          %v749 = vmax.f32 %v619, %v731
          %v750 = vmax.f32 %v620, %v733
          %s751 = scalar_lea.vmem %s353, 96
          %v752 = vld [vmem:[%s751] sm:$0xf]
          %v753 = vld [vmem:[%s751 + $0x4] sm:$0xf]
          %v754 = vld [vmem:[%s751 + $0x8] sm:$0xf]
          %v755 = vld [vmem:[%s751 + $0xc] sm:$0xf]
          %v756 = vld [vmem:[%s751 + $0x10] sm:$0xf]
          %v757 = vld [vmem:[%s751 + $0x14] sm:$0xf]
          %v758 = vld [vmem:[%s751 + $0x18] sm:$0xf]
          %v759 = vld [vmem:[%s751 + $0x1c] sm:$0xf]
          %v768 = vunpack.c.l.b16 %v752
          %v769 = vunpack.c.l.b16 %v753
          %v770 = vunpack.c.l.b16 %v754
          %v771 = vunpack.c.l.b16 %v755
          %v772 = vunpack.c.l.b16 %v756
          %v773 = vunpack.c.l.b16 %v757
          %v774 = vunpack.c.l.b16 %v758
          %v775 = vunpack.c.l.b16 %v759
          %v776 = vpack.c.b16 %v769, %v768
          %v777 = vpack.c.b16 %v771, %v770
          %v778 = vpack.c.b16 %v773, %v772
          %v779 = vpack.c.b16 %v775, %v774
          %v781 = vsel %vm398, %v776, 0
          %v784 = vsel %vm398, %v777, 0
          %v787 = vsel %vm398, %v778, 0
          %v790 = vsel %vm398, %v779, 0
          %792 = vmatprep.subr.bf16.mxu0 0
          %793 = vmatpush1.bf16.msra.mxu0 0
          %794 = vmatprep.subr.bf16.mxu0 0
          %795 = vmatpush1.bf16.msra.mxu0 0
          %796 = vmatprep.subr.bf16.mxu0 0
          %797 = vmatpush1.bf16.msra.mxu0 0
          %798 = vmatprep.subr.bf16.mxu0 0
          %799 = vmatpush1.bf16.msra.mxu0 0
          %800 = vmatprep.subr.bf16.mxu0 0
          %801 = vmatpush1.bf16.msra.mxu0 0
          %802 = vmatprep.subr.bf16.mxu0 0
          %803 = vmatpush1.bf16.msra.mxu0 0
          %804 = vmatprep.subr.bf16.mxu0 0
          %805 = vmatpush1.bf16.msra.mxu0 0
          %806 = vmatprep.subr.bf16.mxu0 %v416
          %807 = vmatpush1.bf16.msra.mxu0 %v413
          %808 = vmatprep.subr.bf16.mxu0 0
          %809 = vmatpush2.bf16.msra.mxu0 0
          %810 = vmatprep.subr.bf16.mxu0 0
          %811 = vmatpush2.bf16.msra.mxu0 0
          %812 = vmatprep.subr.bf16.mxu0 0
          %813 = vmatpush2.bf16.msra.mxu0 0
          %814 = vmatprep.subr.bf16.mxu0 0
          %815 = vmatpush2.bf16.msra.mxu0 0
          %816 = vmatprep.subr.bf16.mxu0 0
          %817 = vmatpush2.bf16.msra.mxu0 0
          %818 = vmatprep.subr.bf16.mxu0 0
          %819 = vmatpush2.bf16.msra.mxu0 0
          %820 = vmatprep.subr.bf16.mxu0 0
          %821 = vmatpush2.bf16.msra.mxu0 0
          %822 = vmatprep.subr.bf16.mxu0 0
          %823 = vmatpush2.bf16.msra.mxu0 0
          %824 = vmatprep.mubr.bf16.mxu0 0
          %825 = vmatmul.mubr.bf16.gmra.mxu0 %v781
          %v826 = vpop.f32.mrf.mxu0
          %v827 = vadd.f32 0.0, %v826
          %v828 = vpop.f32.mrf.mxu0
          %v829 = vadd.f32 0.0, %v828
          %v830 = vpop.f32.mrf.mxu0
          %v831 = vadd.f32 0.0, %v830
          %v832 = vpop.f32.mrf.mxu0
          %v833 = vadd.f32 0.0, %v832
          %834 = vmatprep.mubr.bf16.mxu0 0
          %835 = vmatmul.mubr.bf16.gmra.mxu0 %v784
          %v836 = vpop.f32.mrf.mxu0
          %v837 = vadd.f32 0.0, %v836
          %v838 = vpop.f32.mrf.mxu0
          %v839 = vadd.f32 0.0, %v838
          %v840 = vpop.f32.mrf.mxu0
          %v841 = vadd.f32 0.0, %v840
          %v842 = vpop.f32.mrf.mxu0
          %v843 = vadd.f32 0.0, %v842
          %844 = vmatprep.mubr.bf16.mxu0 0
          %845 = vmatmul.mubr.bf16.gmra.mxu0 %v787
          %v846 = vpop.f32.mrf.mxu0
          %v847 = vadd.f32 0.0, %v846
          %v848 = vpop.f32.mrf.mxu0
          %v849 = vadd.f32 0.0, %v848
          %v850 = vpop.f32.mrf.mxu0
          %v851 = vadd.f32 0.0, %v850
          %v852 = vpop.f32.mrf.mxu0
          %v853 = vadd.f32 0.0, %v852
          %854 = vmatprep.mubr.bf16.mxu0 0
          %855 = vmatmul.mubr.bf16.gmra.mxu0 %v790
          %v856 = vpop.f32.mrf.mxu0
          %v857 = vadd.f32 0.0, %v856
          %v858 = vpop.f32.mrf.mxu0
          %v859 = vadd.f32 0.0, %v858
          %v860 = vpop.f32.mrf.mxu0
          %v861 = vadd.f32 0.0, %v860
          %v862 = vpop.f32.mrf.mxu0
          %v863 = vadd.f32 0.0, %v862
          %864 = vdwg.mxu0
          %v865 = vmax.f32 %v735, %v827
          %v866 = vmax.f32 %v736, %v829
          %v867 = vmax.f32 %v737, %v831
          %v868 = vmax.f32 %v738, %v833
          %v869 = vmax.f32 %v739, %v837
          %v870 = vmax.f32 %v740, %v839
          %v871 = vmax.f32 %v741, %v841
          %v872 = vmax.f32 %v742, %v843
          %v873 = vmax.f32 %v743, %v847
          %v874 = vmax.f32 %v744, %v849
          %v875 = vmax.f32 %v745, %v851
          %v876 = vmax.f32 %v746, %v853
          %v877 = vmax.f32 %v747, %v857
          %v878 = vmax.f32 %v748, %v859
          %v879 = vmax.f32 %v749, %v861
          %v880 = vmax.f32 %v750, %v863
          %v881 = vld [vmem:[%s5] sm:$0x3]
          %v883 = vlaneseq
          %v884 = vshrl.u32 %v883, 7
          %v885 = vsub.s32 0, %v884
          %v886 = vrot.slane %v881, %v885
          %v887 = vlaneseq
          %v888 = vshrl.u32 %v887, 7
          %v889 = vsub.s32 1, %v888
          %v890 = vrot.slane %v881, %v889
          %v893 = vadd.f32 %v865, %v886
          %v894 = vadd.f32 %v866, %v890
          %v895 = vadd.f32 %v867, %v886
          %v896 = vadd.f32 %v868, %v890
          %v897 = vadd.f32 %v869, %v886
          %v898 = vadd.f32 %v870, %v890
          %v899 = vadd.f32 %v871, %v886
          %v900 = vadd.f32 %v872, %v890
          %v901 = vadd.f32 %v873, %v886
          %v902 = vadd.f32 %v874, %v890
          %v903 = vadd.f32 %v875, %v886
          %v904 = vadd.f32 %v876, %v890
          %v905 = vadd.f32 %v877, %v886
          %v906 = vadd.f32 %v878, %v890
          %v907 = vadd.f32 %v879, %v886
          %v908 = vadd.f32 %v880, %v890
          %v909 = vpack.c.bf16 %v895, %v893
          %v910 = vpack.c.bf16 %v899, %v897
          %v911 = vpack.c.bf16 %v903, %v901
          %v912 = vpack.c.bf16 %v907, %v905
          %v913 = vpack.c.bf16 %v896, %v894
          %v914 = vpack.c.bf16 %v900, %v898
          %v915 = vpack.c.bf16 %v904, %v902
          %v916 = vpack.c.bf16 %v908, %v906
          %917 = vxpose.xlu0.c.b16.start [1/8] %v913, 128
          %918 = vxpose.xlu0.c.b16.cont [2/8] %v914, 128
          %919 = vxpose.xlu0.c.b16.cont [3/8] %v915, 128
          %920 = vxpose.xlu0.c.b16.cont [4/8] %v916, 128
          %921 = vxpose.xlu0.c.b16.cont [5/8] 0, 128
          %922 = vxpose.xlu0.c.b16.cont [6/8] 0, 128
          %923 = vxpose.xlu0.c.b16.cont [7/8] 0, 128
          %924 = vxpose.xlu0.c.b16.end [8/8] 0, 128
          %v925 = vpop.trf.xlu0
          %v926 = vpop.trf.xlu0
          %v927 = vpop.trf.xlu0
          %v928 = vpop.trf.xlu0
          %v929 = vpop.trf.xlu0
          %v930 = vpop.trf.xlu0
          %v931 = vpop.trf.xlu0
          %v932 = vpop.trf.xlu0
          %vm933 = vcmask 523264
          %v935 = vsel %vm933, %v925, 0
          %v938 = vsel %vm933, %v926, 0
          %v941 = vsel %vm933, %v927, 0
          %v944 = vsel %vm933, %v928, 0
          %v947 = vsel %vm933, %v929, 0
          %v950 = vsel %vm933, %v930, 0
          %v953 = vsel %vm933, %v931, 0
          %v956 = vsel %vm933, %v932, 0
          %958 = vmatprep.subr.bf16.mxu0 0
          %959 = vmatpush1.bf16.msra.mxu0 0
          %960 = vmatprep.subr.bf16.mxu0 0
          %961 = vmatpush1.bf16.msra.mxu0 0
          %962 = vmatprep.subr.bf16.mxu0 0
          %963 = vmatpush1.bf16.msra.mxu0 0
          %964 = vmatprep.subr.bf16.mxu0 0
          %965 = vmatpush1.bf16.msra.mxu0 0
          %966 = vmatprep.subr.bf16.mxu0 0
          %967 = vmatpush1.bf16.msra.mxu0 %v912
          %968 = vmatprep.subr.bf16.mxu0 0
          %969 = vmatpush1.bf16.msra.mxu0 %v911
          %970 = vmatprep.subr.bf16.mxu0 0
          %971 = vmatpush1.bf16.msra.mxu0 %v910
          %972 = vmatprep.subr.bf16.mxu0 0
          %973 = vmatpush1.bf16.msra.mxu0 %v909
          %974 = vmatprep.subr.bf16.mxu0 0
          %975 = vmatpush2.bf16.msra.mxu0 0
          %976 = vmatprep.subr.bf16.mxu0 0
          %977 = vmatpush2.bf16.msra.mxu0 0
          %978 = vmatprep.subr.bf16.mxu0 0
          %979 = vmatpush2.bf16.msra.mxu0 0
          %980 = vmatprep.subr.bf16.mxu0 0
          %981 = vmatpush2.bf16.msra.mxu0 0
          %982 = vmatprep.subr.bf16.mxu0 0
          %983 = vmatpush2.bf16.msra.mxu0 0
          %984 = vmatprep.subr.bf16.mxu0 0
          %985 = vmatpush2.bf16.msra.mxu0 0
          %986 = vmatprep.subr.bf16.mxu0 0
          %987 = vmatpush2.bf16.msra.mxu0 0
          %988 = vmatprep.subr.bf16.mxu0 0
          %989 = vmatpush2.bf16.msra.mxu0 0
          %990 = vmatprep.mubr.bf16.mxu0 0
          %991 = vmatmul.mubr.bf16.gmra.mxu0 %v935
          %v992 = vpop.f32.mrf.mxu0
          %v993 = vadd.f32 0.0, %v992
          %v994 = vpop.f32.mrf.mxu0
          %v995 = vpop.f32.mrf.mxu0
          %v996 = vadd.f32 0.0, %v995
          %v997 = vpop.f32.mrf.mxu0
          %998 = vmatprep.mubr.bf16.mxu0 0
          %999 = vmatmul.mubr.bf16.gmra.mxu0 %v938
          %v1000 = vpop.f32.mrf.mxu0
          %v1001 = vadd.f32 0.0, %v1000
          %v1002 = vpop.f32.mrf.mxu0
          %v1003 = vpop.f32.mrf.mxu0
          %v1004 = vadd.f32 0.0, %v1003
          %v1005 = vpop.f32.mrf.mxu0
          %1006 = vmatprep.mubr.bf16.mxu0 0
          %1007 = vmatmul.mubr.bf16.gmra.mxu0 %v941
          %v1008 = vpop.f32.mrf.mxu0
          %v1009 = vadd.f32 0.0, %v1008
          %v1010 = vpop.f32.mrf.mxu0
          %v1011 = vpop.f32.mrf.mxu0
          %v1012 = vadd.f32 0.0, %v1011
          %v1013 = vpop.f32.mrf.mxu0
          %1014 = vmatprep.mubr.bf16.mxu0 0
          %1015 = vmatmul.mubr.bf16.gmra.mxu0 %v944
          %v1016 = vpop.f32.mrf.mxu0
          %v1017 = vadd.f32 0.0, %v1016
          %v1018 = vpop.f32.mrf.mxu0
          %v1019 = vpop.f32.mrf.mxu0
          %v1020 = vadd.f32 0.0, %v1019
          %v1021 = vpop.f32.mrf.mxu0
          %1022 = vmatprep.mubr.bf16.mxu0 0
          %1023 = vmatmul.mubr.bf16.gmra.mxu0 %v947
          %v1024 = vpop.f32.mrf.mxu0
          %v1025 = vadd.f32 0.0, %v1024
          %v1026 = vpop.f32.mrf.mxu0
          %v1027 = vpop.f32.mrf.mxu0
          %v1028 = vadd.f32 0.0, %v1027
          %v1029 = vpop.f32.mrf.mxu0
          %1030 = vmatprep.mubr.bf16.mxu0 0
          %1031 = vmatmul.mubr.bf16.gmra.mxu0 %v950
          %v1032 = vpop.f32.mrf.mxu0
          %v1033 = vadd.f32 0.0, %v1032
          %v1034 = vpop.f32.mrf.mxu0
          %v1035 = vpop.f32.mrf.mxu0
          %v1036 = vadd.f32 0.0, %v1035
          %v1037 = vpop.f32.mrf.mxu0
          %1038 = vmatprep.mubr.bf16.mxu0 0
          %1039 = vmatmul.mubr.bf16.gmra.mxu0 %v953
          %v1040 = vpop.f32.mrf.mxu0
          %v1041 = vadd.f32 0.0, %v1040
          %v1042 = vpop.f32.mrf.mxu0
          %v1043 = vpop.f32.mrf.mxu0
          %v1044 = vadd.f32 0.0, %v1043
          %v1045 = vpop.f32.mrf.mxu0
          %1046 = vmatprep.mubr.bf16.mxu0 0
          %1047 = vmatmul.mubr.bf16.gmra.mxu0 %v956
          %v1048 = vpop.f32.mrf.mxu0
          %v1049 = vadd.f32 0.0, %v1048
          %v1050 = vpop.f32.mrf.mxu0
          %v1051 = vpop.f32.mrf.mxu0
          %v1052 = vadd.f32 0.0, %v1051
          %v1053 = vpop.f32.mrf.mxu0
          %1054 = vdwg.mxu0
          %v1055 = vmul.f32 %v993, 0.015625
          %v1056 = vmul.f32 %v996, 0.015625
          %v1057 = vmul.f32 %v1001, 0.015625
          %v1058 = vmul.f32 %v1004, 0.015625
          %v1059 = vmul.f32 %v1009, 0.015625
          %v1060 = vmul.f32 %v1012, 0.015625
          %v1061 = vmul.f32 %v1017, 0.015625
          %v1062 = vmul.f32 %v1020, 0.015625
          %v1063 = vmul.f32 %v1025, 0.015625
          %v1064 = vmul.f32 %v1028, 0.015625
          %v1065 = vmul.f32 %v1033, 0.015625
          %v1066 = vmul.f32 %v1036, 0.015625
          %v1067 = vmul.f32 %v1041, 0.015625
          %v1068 = vmul.f32 %v1044, 0.015625
          %v1069 = vmul.f32 %v1049, 0.015625
          %v1070 = vmul.f32 %v1052, 0.015625
          %1071 = vst [vmem:[#allocation2] sm:$0xff] %v1055
          %1072 = vst [vmem:[#allocation2 + $0x8] sm:$0xff] %v1056
          %1073 = vst [vmem:[#allocation2 + $0x10] sm:$0xff] %v1057
          %1074 = vst [vmem:[#allocation2 + $0x18] sm:$0xff] %v1058
          %1075 = vst [vmem:[#allocation2 + $0x20] sm:$0xff] %v1059
          %1076 = vst [vmem:[#allocation2 + $0x28] sm:$0xff] %v1060
          %1077 = vst [vmem:[#allocation2 + $0x30] sm:$0xff] %v1061
          %1078 = vst [vmem:[#allocation2 + $0x38] sm:$0xff] %v1062
          %1079 = vst [vmem:[#allocation2 + $0x40] sm:$0xff] %v1063
          %1080 = vst [vmem:[#allocation2 + $0x48] sm:$0xff] %v1064
          %1081 = vst [vmem:[#allocation2 + $0x50] sm:$0xff] %v1065
          %1082 = vst [vmem:[#allocation2 + $0x58] sm:$0xff] %v1066
          %1083 = vst [vmem:[#allocation2 + $0x60] sm:$0xff] %v1067
          %1084 = vst [vmem:[#allocation2 + $0x68] sm:$0xff] %v1068
          %1085 = vst [vmem:[#allocation2 + $0x70] sm:$0xff] %v1069
          %1086 = vst [vmem:[#allocation2 + $0x78] sm:$0xff] %v1070
        $region56: #{tpu_custom_call.1} parent=51 // pred_fallthru
          _
        %v1087 = vld [vmem:[%s347] sm:$0xff]
        %v1089 = vcombine.high %v1087, %v1087
        %v1091 = vpack.c.bf16 %v1087, %v1087
        %v1092 = vpack.c.bf16 %v1089, %v1089
        %v1093 = vld [vmem:[%s2] sm:$0xf]
        %v1094 = vld [vmem:[%s2 + $0x4] sm:$0xf]
        %v1095 = vld [vmem:[%s2 + $0x8] sm:$0xf]
        %v1096 = vld [vmem:[%s2 + $0xc] sm:$0xf]
        %v1097 = vld [vmem:[%s2 + $0x10] sm:$0xf]
        %v1098 = vld [vmem:[%s2 + $0x14] sm:$0xf]
        %v1099 = vld [vmem:[%s2 + $0x18] sm:$0xf]
        %v1100 = vld [vmem:[%s2 + $0x1c] sm:$0xf]
        %v1101 = vld [vmem:[%s2 + $0x20] sm:$0xf]
        %v1102 = vld [vmem:[%s2 + $0x24] sm:$0xf]
        %v1103 = vld [vmem:[%s2 + $0x28] sm:$0xf]
        %v1104 = vld [vmem:[%s2 + $0x2c] sm:$0xf]
        %v1105 = vld [vmem:[%s2 + $0x30] sm:$0xf]
        %v1106 = vld [vmem:[%s2 + $0x34] sm:$0xf]
        %v1107 = vld [vmem:[%s2 + $0x38] sm:$0xf]
        %v1108 = vld [vmem:[%s2 + $0x3c] sm:$0xf]
        %v1109 = vld [vmem:[%s3] sm:$0xff]
        %v1110 = vld [vmem:[%s3 + $0x8] sm:$0xff]
        %v1111 = vld [vmem:[%s3 + $0x10] sm:$0xff]
        %v1112 = vld [vmem:[%s3 + $0x18] sm:$0xff]
        %v1113 = vld [vmem:[%s3 + $0x20] sm:$0xff]
        %v1114 = vld [vmem:[%s3 + $0x28] sm:$0xff]
        %v1115 = vld [vmem:[%s3 + $0x30] sm:$0xff]
        %v1116 = vld [vmem:[%s3 + $0x38] sm:$0xff]
        %v1117 = vld [vmem:[%s3 + $0x40] sm:$0xff]
        %v1118 = vld [vmem:[%s3 + $0x48] sm:$0xff]
        %v1119 = vld [vmem:[%s3 + $0x50] sm:$0xff]
        %v1120 = vld [vmem:[%s3 + $0x58] sm:$0xff]
        %v1121 = vld [vmem:[%s3 + $0x60] sm:$0xff]
        %v1122 = vld [vmem:[%s3 + $0x68] sm:$0xff]
        %v1123 = vld [vmem:[%s3 + $0x70] sm:$0xff]
        %v1124 = vld [vmem:[%s3 + $0x78] sm:$0xff]
        %1126 = vset.pattern.permute.xlu0 0
        %1127 = vperm.xlu0 %1126, %v1109
        %v1128 = vpop.permute.xlu0 %1127
        %1131 = vset.pattern.permute.xlu0 0
        %1132 = vperm.xlu0 %1131, %v1110
        %v1133 = vpop.permute.xlu0 %1132
        %1136 = vset.pattern.permute.xlu0 0
        %1137 = vperm.xlu0 %1136, %v1111
        %v1138 = vpop.permute.xlu0 %1137
        %1141 = vset.pattern.permute.xlu0 0
        %1142 = vperm.xlu0 %1141, %v1112
        %v1143 = vpop.permute.xlu0 %1142
        %1146 = vset.pattern.permute.xlu0 0
        %1147 = vperm.xlu0 %1146, %v1113
        %v1148 = vpop.permute.xlu0 %1147
        %1151 = vset.pattern.permute.xlu0 0
        %1152 = vperm.xlu0 %1151, %v1114
        %v1153 = vpop.permute.xlu0 %1152
        %1156 = vset.pattern.permute.xlu0 0
        %1157 = vperm.xlu0 %1156, %v1115
        %v1158 = vpop.permute.xlu0 %1157
        %1161 = vset.pattern.permute.xlu0 0
        %1162 = vperm.xlu0 %1161, %v1116
        %v1163 = vpop.permute.xlu0 %1162
        %1166 = vset.pattern.permute.xlu0 0
        %1167 = vperm.xlu0 %1166, %v1117
        %v1168 = vpop.permute.xlu0 %1167
        %1171 = vset.pattern.permute.xlu0 0
        %1172 = vperm.xlu0 %1171, %v1118
        %v1173 = vpop.permute.xlu0 %1172
        %1176 = vset.pattern.permute.xlu0 0
        %1177 = vperm.xlu0 %1176, %v1119
        %v1178 = vpop.permute.xlu0 %1177
        %1181 = vset.pattern.permute.xlu0 0
        %1182 = vperm.xlu0 %1181, %v1120
        %v1183 = vpop.permute.xlu0 %1182
        %1186 = vset.pattern.permute.xlu0 0
        %1187 = vperm.xlu0 %1186, %v1121
        %v1188 = vpop.permute.xlu0 %1187
        %1191 = vset.pattern.permute.xlu0 0
        %1192 = vperm.xlu0 %1191, %v1122
        %v1193 = vpop.permute.xlu0 %1192
        %1196 = vset.pattern.permute.xlu0 0
        %1197 = vperm.xlu0 %1196, %v1123
        %v1198 = vpop.permute.xlu0 %1197
        %1201 = vset.pattern.permute.xlu0 0
        %1202 = vperm.xlu0 %1201, %v1124
        %v1203 = vpop.permute.xlu0 %1202
        %v1221 = vunpack.c.l.b16 %v1093
        %v1222 = vunpack.c.l.b16 %v1094
        %v1223 = vunpack.c.l.b16 %v1095
        %v1224 = vunpack.c.l.b16 %v1096
        %v1225 = vunpack.c.l.b16 %v1097
        %v1226 = vunpack.c.l.b16 %v1098
        %v1227 = vunpack.c.l.b16 %v1099
        %v1228 = vunpack.c.l.b16 %v1100
        %v1229 = vunpack.c.l.b16 %v1101
        %v1230 = vunpack.c.l.b16 %v1102
        %v1231 = vunpack.c.l.b16 %v1103
        %v1232 = vunpack.c.l.b16 %v1104
        %v1233 = vunpack.c.l.b16 %v1105
        %v1234 = vunpack.c.l.b16 %v1106
        %v1235 = vunpack.c.l.b16 %v1107
        %v1236 = vunpack.c.l.b16 %v1108
        %v1237 = vpack.c.b16 %v1222, %v1221
        %v1238 = vpack.c.b16 %v1224, %v1223
        %v1239 = vpack.c.b16 %v1226, %v1225
        %v1240 = vpack.c.b16 %v1228, %v1227
        %v1241 = vpack.c.b16 %v1230, %v1229
        %v1242 = vpack.c.b16 %v1232, %v1231
        %v1243 = vpack.c.b16 %v1234, %v1233
        %v1244 = vpack.c.b16 %v1236, %v1235
        %vm1245 = vcmask 31744
        %v1247 = vsel %vm1245, %v1237, 0
        %v1250 = vsel %vm1245, %v1238, 0
        %v1253 = vsel %vm1245, %v1239, 0
        %v1256 = vsel %vm1245, %v1240, 0
        %v1259 = vsel %vm1245, %v1241, 0
        %v1262 = vsel %vm1245, %v1242, 0
        %v1265 = vsel %vm1245, %v1243, 0
        %v1268 = vsel %vm1245, %v1244, 0
        %vm1270 = vcmask 1041408
        %v1272 = vsel %vm1270, %v1091, 0
        %v1275 = vsel %vm1270, %v1092, 0
        %1277 = vmatprep.subr.bf16.mxu0 0
        %1278 = vmatpush1.bf16.msra.mxu0 0
        %1279 = vmatprep.subr.bf16.mxu0 0
        %1280 = vmatpush1.bf16.msra.mxu0 0
        %1281 = vmatprep.subr.bf16.mxu0 0
        %1282 = vmatpush1.bf16.msra.mxu0 0
        %1283 = vmatprep.subr.bf16.mxu0 0
        %1284 = vmatpush1.bf16.msra.mxu0 0
        %1285 = vmatprep.subr.bf16.mxu0 0
        %1286 = vmatpush1.bf16.msra.mxu0 0
        %1287 = vmatprep.subr.bf16.mxu0 0
        %1288 = vmatpush1.bf16.msra.mxu0 0
        %1289 = vmatprep.subr.bf16.mxu0 0
        %1290 = vmatpush1.bf16.msra.mxu0 0
        %1291 = vmatprep.subr.bf16.mxu0 %v1275
        %1292 = vmatpush1.bf16.msra.mxu0 %v1272
        %1293 = vmatprep.subr.bf16.mxu0 0
        %1294 = vmatpush2.bf16.msra.mxu0 0
        %1295 = vmatprep.subr.bf16.mxu0 0
        %1296 = vmatpush2.bf16.msra.mxu0 0
        %1297 = vmatprep.subr.bf16.mxu0 0
        %1298 = vmatpush2.bf16.msra.mxu0 0
        %1299 = vmatprep.subr.bf16.mxu0 0
        %1300 = vmatpush2.bf16.msra.mxu0 0
        %1301 = vmatprep.subr.bf16.mxu0 0
        %1302 = vmatpush2.bf16.msra.mxu0 0
        %1303 = vmatprep.subr.bf16.mxu0 0
        %1304 = vmatpush2.bf16.msra.mxu0 0
        %1305 = vmatprep.subr.bf16.mxu0 0
        %1306 = vmatpush2.bf16.msra.mxu0 0
        %1307 = vmatprep.subr.bf16.mxu0 0
        %1308 = vmatpush2.bf16.msra.mxu0 0
        %1309 = vmatprep.mubr.bf16.mxu0 0
        %1310 = vmatmul.mubr.bf16.gmra.mxu0 %v1247
        %v1311 = vpop.f32.mrf.mxu0
        %v1312 = vadd.f32 %v1128, %v1311
        %v1313 = vpop.f32.mrf.mxu0
        %v1314 = vadd.f32 %v1128, %v1313
        %v1315 = vpop.f32.mrf.mxu0
        %v1316 = vadd.f32 %v1133, %v1315
        %v1317 = vpop.f32.mrf.mxu0
        %v1318 = vadd.f32 %v1133, %v1317
        %1319 = vmatprep.mubr.bf16.mxu0 0
        %1320 = vmatmul.mubr.bf16.gmra.mxu0 %v1250
        %v1321 = vpop.f32.mrf.mxu0
        %v1322 = vadd.f32 %v1138, %v1321
        %v1323 = vpop.f32.mrf.mxu0
        %v1324 = vadd.f32 %v1138, %v1323
        %v1325 = vpop.f32.mrf.mxu0
        %v1326 = vadd.f32 %v1143, %v1325
        %v1327 = vpop.f32.mrf.mxu0
        %v1328 = vadd.f32 %v1143, %v1327
        %1329 = vmatprep.mubr.bf16.mxu0 0
        %1330 = vmatmul.mubr.bf16.gmra.mxu0 %v1253
        %v1331 = vpop.f32.mrf.mxu0
        %v1332 = vadd.f32 %v1148, %v1331
        %v1333 = vpop.f32.mrf.mxu0
        %v1334 = vadd.f32 %v1148, %v1333
        %v1335 = vpop.f32.mrf.mxu0
        %v1336 = vadd.f32 %v1153, %v1335
        %v1337 = vpop.f32.mrf.mxu0
        %v1338 = vadd.f32 %v1153, %v1337
        %1339 = vmatprep.mubr.bf16.mxu0 0
        %1340 = vmatmul.mubr.bf16.gmra.mxu0 %v1256
        %v1341 = vpop.f32.mrf.mxu0
        %v1342 = vadd.f32 %v1158, %v1341
        %v1343 = vpop.f32.mrf.mxu0
        %v1344 = vadd.f32 %v1158, %v1343
        %v1345 = vpop.f32.mrf.mxu0
        %v1346 = vadd.f32 %v1163, %v1345
        %v1347 = vpop.f32.mrf.mxu0
        %v1348 = vadd.f32 %v1163, %v1347
        %1349 = vmatprep.mubr.bf16.mxu0 0
        %1350 = vmatmul.mubr.bf16.gmra.mxu0 %v1259
        %v1351 = vpop.f32.mrf.mxu0
        %v1352 = vadd.f32 %v1168, %v1351
        %v1353 = vpop.f32.mrf.mxu0
        %v1354 = vadd.f32 %v1168, %v1353
        %v1355 = vpop.f32.mrf.mxu0
        %v1356 = vadd.f32 %v1173, %v1355
        %v1357 = vpop.f32.mrf.mxu0
        %v1358 = vadd.f32 %v1173, %v1357
        %1359 = vmatprep.mubr.bf16.mxu0 0
        %1360 = vmatmul.mubr.bf16.gmra.mxu0 %v1262
        %v1361 = vpop.f32.mrf.mxu0
        %v1362 = vadd.f32 %v1178, %v1361
        %v1363 = vpop.f32.mrf.mxu0
        %v1364 = vadd.f32 %v1178, %v1363
        %v1365 = vpop.f32.mrf.mxu0
        %v1366 = vadd.f32 %v1183, %v1365
        %v1367 = vpop.f32.mrf.mxu0
        %v1368 = vadd.f32 %v1183, %v1367
        %1369 = vmatprep.mubr.bf16.mxu0 0
        %1370 = vmatmul.mubr.bf16.gmra.mxu0 %v1265
        %v1371 = vpop.f32.mrf.mxu0
        %v1372 = vadd.f32 %v1188, %v1371
        %v1373 = vpop.f32.mrf.mxu0
        %v1374 = vadd.f32 %v1188, %v1373
        %v1375 = vpop.f32.mrf.mxu0
        %v1376 = vadd.f32 %v1193, %v1375
        %v1377 = vpop.f32.mrf.mxu0
        %v1378 = vadd.f32 %v1193, %v1377
        %1379 = vmatprep.mubr.bf16.mxu0 0
        %1380 = vmatmul.mubr.bf16.gmra.mxu0 %v1268
        %v1381 = vpop.f32.mrf.mxu0
        %v1382 = vadd.f32 %v1198, %v1381
        %v1383 = vpop.f32.mrf.mxu0
        %v1384 = vadd.f32 %v1198, %v1383
        %v1385 = vpop.f32.mrf.mxu0
        %v1386 = vadd.f32 %v1203, %v1385
        %v1387 = vpop.f32.mrf.mxu0
        %v1388 = vadd.f32 %v1203, %v1387
        %1389 = vdwg.mxu0
        %v1390 = vld [vmem:[#allocation2] sm:$0xff]
        %v1391 = vld [vmem:[#allocation2 + $0x8] sm:$0xff]
        %v1392 = vld [vmem:[#allocation2 + $0x10] sm:$0xff]
        %v1393 = vld [vmem:[#allocation2 + $0x18] sm:$0xff]
        %v1394 = vld [vmem:[#allocation2 + $0x20] sm:$0xff]
        %v1395 = vld [vmem:[#allocation2 + $0x28] sm:$0xff]
        %v1396 = vld [vmem:[#allocation2 + $0x30] sm:$0xff]
        %v1397 = vld [vmem:[#allocation2 + $0x38] sm:$0xff]
        %v1398 = vld [vmem:[#allocation2 + $0x40] sm:$0xff]
        %v1399 = vld [vmem:[#allocation2 + $0x48] sm:$0xff]
        %v1400 = vld [vmem:[#allocation2 + $0x50] sm:$0xff]
        %v1401 = vld [vmem:[#allocation2 + $0x58] sm:$0xff]
        %v1402 = vld [vmem:[#allocation2 + $0x60] sm:$0xff]
        %v1403 = vld [vmem:[#allocation2 + $0x68] sm:$0xff]
        %v1404 = vld [vmem:[#allocation2 + $0x70] sm:$0xff]
        %v1405 = vld [vmem:[#allocation2 + $0x78] sm:$0xff]
        %v1406 = vpack.c.bf16 %v1391, %v1390
        %v1407 = vpack.c.bf16 %v1393, %v1392
        %v1408 = vpack.c.bf16 %v1395, %v1394
        %v1409 = vpack.c.bf16 %v1397, %v1396
        %v1410 = vpack.c.bf16 %v1399, %v1398
        %v1411 = vpack.c.bf16 %v1401, %v1400
        %v1412 = vpack.c.bf16 %v1403, %v1402
        %v1413 = vpack.c.bf16 %v1405, %v1404
        %v1414 = vpack.c.bf16 %v1316, %v1312
        %v1415 = vpack.c.bf16 %v1318, %v1314
        %v1416 = vpack.c.bf16 %v1326, %v1322
        %v1417 = vpack.c.bf16 %v1328, %v1324
        %v1418 = vpack.c.bf16 %v1336, %v1332
        %v1419 = vpack.c.bf16 %v1338, %v1334
        %v1420 = vpack.c.bf16 %v1346, %v1342
        %v1421 = vpack.c.bf16 %v1348, %v1344
        %v1422 = vpack.c.bf16 %v1356, %v1352
        %v1423 = vpack.c.bf16 %v1358, %v1354
        %v1424 = vpack.c.bf16 %v1366, %v1362
        %v1425 = vpack.c.bf16 %v1368, %v1364
        %v1426 = vpack.c.bf16 %v1376, %v1372
        %v1427 = vpack.c.bf16 %v1378, %v1374
        %v1428 = vpack.c.bf16 %v1386, %v1382
        %v1429 = vpack.c.bf16 %v1388, %v1384
        %1430 = vmatprep.subr.bf16.mxu0 %v1429
        %1431 = vmatpush1.bf16.msra.mxu0 %v1428
        %1432 = vmatprep.subr.bf16.mxu0 %v1427
        %1433 = vmatpush1.bf16.msra.mxu0 %v1426
        %1434 = vmatprep.subr.bf16.mxu0 %v1425
        %1435 = vmatpush1.bf16.msra.mxu0 %v1424
        %1436 = vmatprep.subr.bf16.mxu0 %v1423
        %1437 = vmatpush1.bf16.msra.mxu0 %v1422
        %1438 = vmatprep.subr.bf16.mxu0 %v1421
        %1439 = vmatpush1.bf16.msra.mxu0 %v1420
        %1440 = vmatprep.subr.bf16.mxu0 %v1419
        %1441 = vmatpush1.bf16.msra.mxu0 %v1418
        %1442 = vmatprep.subr.bf16.mxu0 %v1417
        %1443 = vmatpush1.bf16.msra.mxu0 %v1416
        %1444 = vmatprep.subr.bf16.mxu0 %v1415
        %1445 = vmatpush1.bf16.msra.mxu0 %v1414
        %1446 = vmatprep.subr.bf16.mxu0 0
        %1447 = vmatpush2.bf16.msra.mxu0 0
        %1448 = vmatprep.subr.bf16.mxu0 0
        %1449 = vmatpush2.bf16.msra.mxu0 0
        %1450 = vmatprep.subr.bf16.mxu0 0
        %1451 = vmatpush2.bf16.msra.mxu0 0
        %1452 = vmatprep.subr.bf16.mxu0 0
        %1453 = vmatpush2.bf16.msra.mxu0 0
        %1454 = vmatprep.subr.bf16.mxu0 0
        %1455 = vmatpush2.bf16.msra.mxu0 0
        %1456 = vmatprep.subr.bf16.mxu0 0
        %1457 = vmatpush2.bf16.msra.mxu0 0
        %1458 = vmatprep.subr.bf16.mxu0 0
        %1459 = vmatpush2.bf16.msra.mxu0 0
        %1460 = vmatprep.subr.bf16.mxu0 0
        %1461 = vmatpush2.bf16.msra.mxu0 0
        %1462 = vmatprep.mubr.bf16.mxu0 0
        %1463 = vmatmul.mubr.bf16.gmra.mxu0 %v1406
        %v1464 = vpop.f32.mrf.mxu0
        %v1465 = vadd.f32 0.0, %v1464
        %v1466 = vpop.f32.mrf.mxu0
        %v1467 = vadd.f32 0.0, %v1466
        %v1468 = vpop.f32.mrf.mxu0
        %v1469 = vadd.f32 0.0, %v1468
        %v1470 = vpop.f32.mrf.mxu0
        %v1471 = vadd.f32 0.0, %v1470
        %1472 = vmatprep.mubr.bf16.mxu0 0
        %1473 = vmatmul.mubr.bf16.gmra.mxu0 %v1407
        %v1474 = vpop.f32.mrf.mxu0
        %v1475 = vadd.f32 0.0, %v1474
        %v1476 = vpop.f32.mrf.mxu0
        %v1477 = vadd.f32 0.0, %v1476
        %v1478 = vpop.f32.mrf.mxu0
        %v1479 = vadd.f32 0.0, %v1478
        %v1480 = vpop.f32.mrf.mxu0
        %v1481 = vadd.f32 0.0, %v1480
        %1482 = vmatprep.mubr.bf16.mxu0 0
        %1483 = vmatmul.mubr.bf16.gmra.mxu0 %v1408
        %v1484 = vpop.f32.mrf.mxu0
        %v1485 = vadd.f32 0.0, %v1484
        %v1486 = vpop.f32.mrf.mxu0
        %v1487 = vadd.f32 0.0, %v1486
        %v1488 = vpop.f32.mrf.mxu0
        %v1489 = vadd.f32 0.0, %v1488
        %v1490 = vpop.f32.mrf.mxu0
        %v1491 = vadd.f32 0.0, %v1490
        %1492 = vmatprep.mubr.bf16.mxu0 0
        %1493 = vmatmul.mubr.bf16.gmra.mxu0 %v1409
        %v1494 = vpop.f32.mrf.mxu0
        %v1495 = vadd.f32 0.0, %v1494
        %v1496 = vpop.f32.mrf.mxu0
        %v1497 = vadd.f32 0.0, %v1496
        %v1498 = vpop.f32.mrf.mxu0
        %v1499 = vadd.f32 0.0, %v1498
        %v1500 = vpop.f32.mrf.mxu0
        %v1501 = vadd.f32 0.0, %v1500
        %1502 = vmatprep.mubr.bf16.mxu0 0
        %1503 = vmatmul.mubr.bf16.gmra.mxu0 %v1410
        %v1504 = vpop.f32.mrf.mxu0
        %v1505 = vadd.f32 0.0, %v1504
        %v1506 = vpop.f32.mrf.mxu0
        %v1507 = vadd.f32 0.0, %v1506
        %v1508 = vpop.f32.mrf.mxu0
        %v1509 = vadd.f32 0.0, %v1508
        %v1510 = vpop.f32.mrf.mxu0
        %v1511 = vadd.f32 0.0, %v1510
        %1512 = vmatprep.mubr.bf16.mxu0 0
        %1513 = vmatmul.mubr.bf16.gmra.mxu0 %v1411
        %v1514 = vpop.f32.mrf.mxu0
        %v1515 = vadd.f32 0.0, %v1514
        %v1516 = vpop.f32.mrf.mxu0
        %v1517 = vadd.f32 0.0, %v1516
        %v1518 = vpop.f32.mrf.mxu0
        %v1519 = vadd.f32 0.0, %v1518
        %v1520 = vpop.f32.mrf.mxu0
        %v1521 = vadd.f32 0.0, %v1520
        %1522 = vmatprep.mubr.bf16.mxu0 0
        %1523 = vmatmul.mubr.bf16.gmra.mxu0 %v1412
        %v1524 = vpop.f32.mrf.mxu0
        %v1525 = vadd.f32 0.0, %v1524
        %v1526 = vpop.f32.mrf.mxu0
        %v1527 = vadd.f32 0.0, %v1526
        %v1528 = vpop.f32.mrf.mxu0
        %v1529 = vadd.f32 0.0, %v1528
        %v1530 = vpop.f32.mrf.mxu0
        %v1531 = vadd.f32 0.0, %v1530
        %1532 = vmatprep.mubr.bf16.mxu0 0
        %1533 = vmatmul.mubr.bf16.gmra.mxu0 %v1413
        %v1534 = vpop.f32.mrf.mxu0
        %v1535 = vadd.f32 0.0, %v1534
        %v1536 = vpop.f32.mrf.mxu0
        %v1537 = vadd.f32 0.0, %v1536
        %v1538 = vpop.f32.mrf.mxu0
        %v1539 = vadd.f32 0.0, %v1538
        %v1540 = vpop.f32.mrf.mxu0
        %v1541 = vadd.f32 0.0, %v1540
        %1542 = vdwg.mxu0
        %v1543 = vld [vmem:[%s6] sm:$0x3]
        %v1544 = vpack.c.bf16 %v1469, %v1465
        %v1545 = vpack.c.bf16 %v1471, %v1467
        %v1546 = vpack.c.bf16 %v1479, %v1475
        %v1547 = vpack.c.bf16 %v1481, %v1477
        %v1548 = vpack.c.bf16 %v1489, %v1485
        %v1549 = vpack.c.bf16 %v1491, %v1487
        %v1550 = vpack.c.bf16 %v1499, %v1495
        %v1551 = vpack.c.bf16 %v1501, %v1497
        %v1552 = vpack.c.bf16 %v1509, %v1505
        %v1553 = vpack.c.bf16 %v1511, %v1507
        %v1554 = vpack.c.bf16 %v1519, %v1515
        %v1555 = vpack.c.bf16 %v1521, %v1517
        %v1556 = vpack.c.bf16 %v1529, %v1525
        %v1557 = vpack.c.bf16 %v1531, %v1527
        %v1558 = vpack.c.bf16 %v1539, %v1535
        %v1559 = vpack.c.bf16 %v1541, %v1537
        %v1560 = vld [vmem:[%s7] sm:$0xf]
        %1562 = vset.pattern.permute.xlu0 0
        %1563 = vperm.xlu0 %1562, %v1560
        %v1564 = vpop.permute.xlu0 %1563
        %1566 = vmatprep.subr.bf16.mxu0 %v1559
        %1567 = vmatpush1.bf16.msra.mxu0 %v1558
        %1568 = vmatprep.subr.bf16.mxu0 %v1557
        %1569 = vmatpush1.bf16.msra.mxu0 %v1556
        %1570 = vmatprep.subr.bf16.mxu0 %v1555
        %1571 = vmatpush1.bf16.msra.mxu0 %v1554
        %1572 = vmatprep.subr.bf16.mxu0 %v1553
        %1573 = vmatpush1.bf16.msra.mxu0 %v1552
        %1574 = vmatprep.subr.bf16.mxu0 %v1551
        %1575 = vmatpush1.bf16.msra.mxu0 %v1550
        %1576 = vmatprep.subr.bf16.mxu0 %v1549
        %1577 = vmatpush1.bf16.msra.mxu0 %v1548
        %1578 = vmatprep.subr.bf16.mxu0 %v1547
        %1579 = vmatpush1.bf16.msra.mxu0 %v1546
        %1580 = vmatprep.subr.bf16.mxu0 %v1545
        %1581 = vmatpush1.bf16.msra.mxu0 %v1544
        %1582 = vmatprep.subr.bf16.mxu0 0
        %1583 = vmatpush2.bf16.msra.mxu0 0
        %1584 = vmatprep.subr.bf16.mxu0 0
        %1585 = vmatpush2.bf16.msra.mxu0 0
        %1586 = vmatprep.subr.bf16.mxu0 0
        %1587 = vmatpush2.bf16.msra.mxu0 0
        %1588 = vmatprep.subr.bf16.mxu0 0
        %1589 = vmatpush2.bf16.msra.mxu0 0
        %1590 = vmatprep.subr.bf16.mxu0 0
        %1591 = vmatpush2.bf16.msra.mxu0 0
        %1592 = vmatprep.subr.bf16.mxu0 0
        %1593 = vmatpush2.bf16.msra.mxu0 0
        %1594 = vmatprep.subr.bf16.mxu0 0
        %1595 = vmatpush2.bf16.msra.mxu0 0
        %1596 = vmatprep.subr.bf16.mxu0 0
        %1597 = vmatpush2.bf16.msra.mxu0 0
        %1598 = vmatprep.mubr.bf16.mxu0 0
        %1599 = vmatmul.mubr.bf16.gmra.mxu0 %v1543
        %v1600 = vpop.f32.mrf.mxu0
        %v1601 = vadd.f32 %v1564, %v1600
        %v1602 = vpop.f32.mrf.mxu0
        %v1603 = vadd.f32 %v1564, %v1602
        %v1604 = vpop.f32.mrf.mxu0
        %v1605 = vpop.f32.mrf.mxu0
        %1606 = vdwg.mxu0
        %v1607 = vadd.f32 %v1601, %v1087
        %v1608 = vadd.f32 %v1603, %v1089
        %v1611 = vcombine.low %v1607, %v1608
        %1613 = vst [vmem:[%s338] sm:$0xff] %v1611
        %s1614 = sand.u32 %s224, 1
        %s1615 = scalar_lea.sflag [#allocation4], %s1614
        %s1616 = sand.u32 %s224, 1
        %s1617 = smul.addr %s1616, 8
        %s1618 = scalar_lea.vmem [#allocation3], %s1617
        // Predicated region
        $region57: #{tpu_custom_call.1} parent=51 // pred_check
          %p1619 = pneg %p234
        $region58: #{tpu_custom_call.1} parent=51 // pred_check_branch
          %1621 = sbr.rel (%p1619) target = $region60
        $region59: #{tpu_custom_call.1} parent=51 // pred_region
          %s1622 = smul.u32 2, %s27
          %s1624 = ssub.s32 128, 128
          %1625 = vsyncadd %s1615, %s1624
          %s1626 = smul.addr %s26, 2
          %s1627 = sadd.s32 %s1622, %s1626
          %s1628 = smul.addr %s1627, 64
          %s1629 = scalar_lea.hbm %s8, %s1628
          %s1631 = sshll.u32 %s1618, 4
          %s1632 = int_to_ptr.vmem [resolvable:$true] %s1631
          %1634 = dma.vmem_to_hbm [thread:$0]  %s1632, 128, %s1629, %s1615
        $region60: #{tpu_custom_call.1} parent=51 // pred_fallthru
          _
      $region52: #{tpu_custom_call.1} parent=5 // pred_fallthru
        _
      %p1635 = scmp.le.s32.totalorder 2, %s17
      // Predicated region
      $region61: #{tpu_custom_call.1} parent=5 // pred_check
        %p1636 = pneg %p1635
      $region62: #{tpu_custom_call.1} parent=5 // pred_check_branch
        %1638 = sbr.rel (%p1636) target = $region64
      $region63: #{tpu_custom_call.1} parent=5 // pred_region
        %s1639 = ssub.s32 %s17, 2
        // Predicated region
        $region65: #{tpu_custom_call.1} parent=63 // pred_check
          %p1640 = pneg %p240
        $region66: #{tpu_custom_call.1} parent=63 // pred_check_branch
          %1642 = sbr.rel (%p1640) target = $region68
        $region67: #{tpu_custom_call.1} parent=63 // pred_region
          %s1643 = sand.u32 %s225, 1
          %s1644 = scalar_lea.sflag [#allocation4], %s1643
          %s1645 = sand.u32 %s225, 1
          %s1646 = smul.addr %s1645, 8
          %s1647 = scalar_lea.vmem [#allocation3], %s1646
          %1648 = dma.done %s1644, 128
        $region68: #{tpu_custom_call.1} parent=63 // pred_fallthru
          _
      $region64: #{tpu_custom_call.1} parent=5 // pred_fallthru
        _
    $region6: #{tpu_custom_call.1} parent=1 // loop_footer
      %s21 = sadd.s32 1, %s17
    $region7: #{tpu_custom_call.1} parent=1 // loop_footer_branch
      %16 = sbr.rel target = $region3
    $region8: #{tpu_custom_call.1} parent=1 // loop_exit
      _
    %1649 = vsyncpa [#allocation4], 1
    %s1650 = scalar_lea.sflag [#allocation4], 1
    %1651 = vsyncpa %s1650, 1

</llo_original>
